<compile_context>
chip_gen: v7x
topology: tpu7x:2x2x1
jax: 0.10.0
libtpu: 0.0.40
codegen_flags: <defaults>
</compile_context>

<pallas_src>
import math

import jax
import jax.numpy as jnp
from jax.experimental import pallas as pl
from jax.experimental.pallas import tpu as pltpu


def _attn_gated_kernel(
    x_ref,        # (1, TN, L)      input storage dtype (cast in-kernel)
    mask_ref,     # (1, MR, TN)     f32, MR in {1, C}
    wfc_ref, bfc_ref,      # (L, D)   cdt,  (1, D)     f32
    wab_ref, bab_ref,      # (D, 2D2) cdt,  (1, 2D2)   f32   fused attention_a|b
    wc_ref, bc_ref,        # (D2, C)  cdt,  (C, 1)     f32
    wcls_ref, bcls_ref,    # (D, C)   cdt,  (1, C)     f32
    logits_ref,   # (1, C, C)    f32  (resident across the N grid axis)
    attn_ref,     # (1, C, Npad) f32  (resident across the N grid axis)
    m_ref,        # (C, 1) f32 scratch: running max
    l_ref,        # (C, 1) f32 scratch: running sum of exp
    acc_ref,      # (C, D) f32 scratch: un-normalised pooled features
    mt_ref,       # (num_n, C, 1) f32 scratch: running-max snapshot per tile
):
    n_idx = pl.program_id(1)
    tn = x_ref.shape[1]
    n_pad = attn_ref.shape[2]
    num_n = mt_ref.shape[0]
    cdt = wfc_ref.dtype            # compute dtype = weights' dtype
    d2 = wc_ref.shape[0]

    @pl.when(n_idx == 0)
    def _init():
        m_ref[...] = jnp.full_like(m_ref, -jnp.inf)
        l_ref[...] = jnp.zeros_like(l_ref)
        acc_ref[...] = jnp.zeros_like(acc_ref)

    # Cast the x tile to the compute dtype in-kernel (no extra HBM pass).
    x_t = x_ref[0].astype(cdt)                                        # (TN, L)

    # fc: Linear(L, D) + ReLU   (f32 accumulation / bias / ReLU)
    h32 = jnp.dot(x_t, wfc_ref[...], preferred_element_type=jnp.float32)
    h32 = jnp.maximum(h32 + bfc_ref[...], 0.0)                        # (TN, D)
    h = h32.astype(cdt)

    # attention_a | attention_b fused into one matmul, then tanh / sigmoid.
    ab = jnp.dot(h, wab_ref[...], preferred_element_type=jnp.float32)
    ab = ab + bab_ref[...]                                            # (TN, 2*D2)
    a = jnp.tanh(ab[:, :d2])
    # sigmoid(x) = 0.5*tanh(0.5*x) + 0.5  -> both gates use the EUP tanh path.
    b = 0.5 * jnp.tanh(0.5 * ab[:, d2:]) + 0.5
    gated = (a * b).astype(cdt)                                       # (TN, D2)

    # attention_c: scores laid out lane-dense as (C, TN):  wc^T @ gated^T
    s = jax.lax.dot_general(
        wc_ref[...], gated, (((0,), (1,)), ((), ())),
        preferred_element_type=jnp.float32)                           # (C, TN)
    s = s + bc_ref[...] + mask_ref[0]      # mask broadcasts over C if MR == 1

    # Online (flash-style) softmax statistics + pooled-feature accumulator.
    m_prev = m_ref[...]                                               # (C, 1)
    m_new = jnp.maximum(m_prev, jnp.max(s, axis=1, keepdims=True))
    alpha = jnp.exp(m_prev - m_new)
    p = jnp.exp(s - m_new)                                            # (C, TN)
    l_ref[...] = alpha * l_ref[...] + jnp.sum(p, axis=1, keepdims=True)
    acc_ref[...] = alpha * acc_ref[...] + jnp.dot(
        p.astype(cdt), h, preferred_element_type=jnp.float32)         # (C, D)
    m_ref[...] = m_new
    mt_ref[n_idx] = m_new          # snapshot of the running max for this tile

    # Stash the already-computed p (exp(s - m_tile)); no exp recompute later.
    if tn == n_pad:
        attn_ref[0] = p.astype(attn_ref.dtype)
    else:
        col = pl.multiple_of(n_idx * tn, 128)
        attn_ref[0, :, pl.ds(col, tn)] = p.astype(attn_ref.dtype)

    @pl.when(n_idx == pl.num_programs(1) - 1)
    def _finalize():
        m_fin = m_ref[...]                                            # (C, 1)
        inv_l = 1.0 / l_ref[...]               # exact; runs once per bag
        # Rescale each stashed tile: A = exp(s - m_tile) * exp(m_tile - m_fin)/l.
        for i in range(num_n):                 # static unroll (num_n is static)
            scale_i = jnp.exp(mt_ref[i] - m_fin) * inv_l              # (C, 1)
            tile = attn_ref[0, :, i * tn:(i + 1) * tn]
            attn_ref[0, :, i * tn:(i + 1) * tn] = (
                tile * scale_i).astype(attn_ref.dtype)
        # M = A @ h pooled over the whole bag, then classifiers: Linear(D, C).
        M = (acc_ref[...] * inv_l).astype(cdt)                        # (C, D)
        logits = jnp.dot(M, wcls_ref[...],
                         preferred_element_type=jnp.float32) + bcls_ref[...]
        logits_ref[0] = logits.astype(logits_ref.dtype)


def _pick_block_n(N, cap=512):
    """Largest multiple-of-128 tile <= cap that covers N (N is padded up)."""
    n_up = -(-N // 128) * 128
    return max(128, min(cap, n_up))


def _default_vmem_limit(n_pad, L, D, D2, C, mask_rows, block_n, num_n,
                        x_itemsize, cdt_itemsize):
    """Derive a VMEM request from actual buffer sizes (v7x only has 64 MiB)."""
    x_buf = 2 * block_n * L * x_itemsize                    # double-buffered x
    mask_buf = 2 * mask_rows * block_n * 4
    w_buf = 2 * (L * D + D * 2 * D2 + D2 * C + D * C) * cdt_itemsize
    b_buf = 2 * (D + 2 * D2 + 2 * C) * 4
    out_buf = 2 * (C * C + C * n_pad) * 4
    scratch = (2 * C + C * D + num_n * 8 * 128) * 4
    interm = 2 * block_n * (D + 3 * D2 + C) * 4             # h / ab / gated / p
    need = x_buf + mask_buf + w_buf + b_buf + out_buf + scratch + interm
    limit = min(max(2 * need + (8 << 20), 32 << 20), 48 << 20)
    return int(max(limit, need + (8 << 20)))


def attn_net_gated_forward(x, attn_mask, params, *, block_n=None,
                           compute_dtype=None, vmem_limit_bytes=None):
    """x: (B, N, L). attn_mask reshapeable to (B, C, N), or per-instance
    (B, N) / (B, 1, N) (broadcast over classes in-kernel). Masked entries must
    use a large-negative finite value (e.g. -1e9), not -inf.
    Returns (logits (B, C, C), A (B, C, N))."""
    (wfc, bfc, wa, ba, wb, bb, wc, bc, wcls, bcls) = params
    B, N, L = x.shape
    D = wfc.shape[1]
    D2 = wa.shape[1]
    C = wc.shape[1]

    cdt = jnp.dtype(compute_dtype) if compute_dtype is not None else x.dtype

    if block_n is None:
        block_n = _pick_block_n(N)
    block_n = max(128, -(-block_n // 128) * 128)   # round up to multiple of 128
    num_n = -(-N // block_n)                       # cdiv
    n_pad_total = num_n * block_n
    pad = n_pad_total - N

    # Weights in compute dtype (cast once, tiny); biases / mask stay f32.
    # attention_a and attention_b fused into a single (D, 2*D2) weight.
    wfc_k = wfc.astype(cdt)
    wab_k = jnp.concatenate([wa, wb], axis=1).astype(cdt)          # (D, 2*D2)
    wc_k = wc.astype(cdt)
    wcls_k = wcls.astype(cdt)
    bfc_k = bfc.reshape(1, D).astype(jnp.float32)
    bab_k = jnp.concatenate(
        [ba.reshape(1, D2), bb.reshape(1, D2)], axis=1).astype(jnp.float32)
    bc_k = bc.reshape(C, 1).astype(jnp.float32)   # (C, 1): broadcasts over (C, TN)
    bcls_k = bcls.reshape(1, C).astype(jnp.float32)

    # Mask: full per-class (B, C, N) or compact per-instance (B, 1, N).
    if attn_mask.size == B * N:
        mask = attn_mask.reshape(B, 1, N).astype(jnp.float32)
        mask_rows = 1
    else:
        mask = attn_mask.reshape(B, C, N).astype(jnp.float32)
        mask_rows = C

    # Pad the instance axis (x with zeros, mask with -1e9) instead of the
    # block_n = N fallback, so the pipeline & VMEM tile sizes stay bounded.
    x_in = x
    if pad:
        x_in = jnp.pad(x, ((0, 0), (0, pad), (0, 0)))
        mask = jnp.pad(mask, ((0, 0), (0, 0), (0, pad)), constant_values=-1e9)

    if vmem_limit_bytes is None:
        vmem_limit_bytes = _default_vmem_limit(
            n_pad_total, L, D, D2, C, mask_rows, block_n, num_n,
            jnp.dtype(x.dtype).itemsize, jnp.dtype(cdt).itemsize)

    def shared(shape):
        return pl.BlockSpec(shape, lambda b, n: (0,) * len(shape))

    in_specs = [
        pl.BlockSpec((1, block_n, L), lambda b, n: (b, n, 0)),        # x tiles
        pl.BlockSpec((1, mask_rows, block_n), lambda b, n: (b, 0, n)),  # mask
        shared((L, D)), shared((1, D)),              # fc
        shared((D, 2 * D2)), shared((1, 2 * D2)),    # fused attention_a|b
        shared((D2, C)), shared((C, 1)),             # attention_c
        shared((D, C)), shared((1, C)),              # classifiers
    ]
    out_specs = (
        pl.BlockSpec((1, C, C), lambda b, n: (b, 0, 0)),           # logits
        pl.BlockSpec((1, C, n_pad_total), lambda b, n: (b, 0, 0)),  # A (C, Npad)
    )
    out_shape = (
        jax.ShapeDtypeStruct((B, C, C), jnp.float32),
        jax.ShapeDtypeStruct((B, C, n_pad_total), jnp.float32),
    )
    scratch_shapes = [
        pltpu.VMEM((C, 1), jnp.float32),          # running max
        pltpu.VMEM((C, 1), jnp.float32),          # running sum(exp)
        pltpu.VMEM((C, D), jnp.float32),          # pooled-feature accumulator
        pltpu.VMEM((num_n, C, 1), jnp.float32),   # per-tile running-max snapshot
    ]

    logits, A = pl.pallas_call(
        _attn_gated_kernel,
        grid=(B, num_n),
        in_specs=in_specs,
        out_specs=out_specs,
        out_shape=out_shape,
        scratch_shapes=scratch_shapes,
        compiler_params=pltpu.CompilerParams(
            dimension_semantics=("parallel", "arbitrary"),
            vmem_limit_bytes=vmem_limit_bytes,
        ),
    )(x_in, mask, wfc_k, bfc_k, wab_k, bab_k, wc_k, bc_k, wcls_k, bcls_k)

    if pad:
        A = A[:, :, :N]
    return logits, A


def _xavier_uniform(key, fan_in, fan_out):
    # torch.nn.init.xavier_uniform_ bound = sqrt(6 / (fan_in + fan_out));
    # symmetric in fan_in/fan_out, so the (in, out) storage layout is equivalent.
    bound = math.sqrt(6.0 / (fan_in + fan_out))
    return jax.random.uniform(key, (fan_in, fan_out), jnp.float32,
                              minval=-bound, maxval=bound)


def init_params(key, L, D, D2, n_classes):
    keys = jax.random.split(key, 5)
    wfc = _xavier_uniform(keys[0], L, D)
    wa = _xavier_uniform(keys[1], D, D2)
    wb = _xavier_uniform(keys[2], D, D2)
    wc = _xavier_uniform(keys[3], D2, n_classes)
    wcls = _xavier_uniform(keys[4], D, n_classes)
    # all biases fill_(0.0) in the reference module
    bfc = jnp.zeros((1, D), jnp.float32)
    ba = jnp.zeros((1, D2), jnp.float32)
    bb = jnp.zeros((1, D2), jnp.float32)
    bc = jnp.zeros((1, n_classes), jnp.float32)
    bcls = jnp.zeros((1, n_classes), jnp.float32)
    return (wfc, bfc, wa, ba, wb, bb, wc, bc, wcls, bcls)


def _reference_forward(x, attn_mask, params):
    """Pure-JAX reference mirroring the torch forward (for sanity checks)."""
    (wfc, bfc, wa, ba, wb, bb, wc, bc, wcls, bcls) = params
    h = jnp.maximum(x @ wfc + bfc.reshape(1, 1, -1), 0.0)
    a = jnp.tanh(h @ wa + ba.reshape(1, 1, -1))
    b = jax.nn.sigmoid(h @ wb + bb.reshape(1, 1, -1))
    A = (a * b) @ wc + bc.reshape(1, 1, -1)        # (B, N, C)
    A = jnp.transpose(A, (0, 2, 1))                # (B, C, N)
    A = A + attn_mask.reshape(A.shape)
    A = jax.nn.softmax(A, axis=2)
    M = jnp.einsum("bcn,bnd->bcd", A, h)
    logits = M @ wcls + bcls.reshape(1, 1, -1)
    return logits, A


if __name__ == "__main__":
    # Small shapes consistent with the module (L features, D/D2 hidden,
    # C = n_classes).  N=320 is NOT a multiple of 128 -> exercises padding;
    # block_n=128 forces 3 instance tiles per bag (cross-tile online softmax).
    B, N, L, D, D2, C = 2, 320, 128, 128, 128, 3

    key = jax.random.PRNGKey(0)
    k_x, k_m1, k_m2, k_p, k_b = jax.random.split(key, 5)

    x = jax.random.normal(k_x, (B, N, L), jnp.float32)
    # per-class attention mask: 0 for valid, -1e9 for masked-out instances
    mask_bits_a = jax.random.bernoulli(k_m1, p=0.85, shape=(B, C, N))
    mask_a = jnp.where(mask_bits_a, 0.0, -1e9).astype(jnp.float32)
    # per-instance mask (replicated over classes): compact (B, N) form
    mask_bits_b = jax.random.bernoulli(k_m2, p=0.85, shape=(B, N))
    mask_b_inst = jnp.where(mask_bits_b, 0.0, -1e9).astype(jnp.float32)
    mask_b_full = jnp.broadcast_to(mask_b_inst[:, None, :], (B, C, N))

    params = init_params(k_p, L, D, D2, C)
    # The torch module zero-fills biases; randomize them here (forward formula
    # identical) so the bias-add paths are actually exercised by the check.
    (wfc, bfc, wa, ba, wb, bb, wc, bc, wcls, bcls) = params
    bk = jax.random.split(k_b, 5)
    bfc = 0.1 * jax.random.normal(bk[0], bfc.shape, jnp.float32)
    ba = 0.1 * jax.random.normal(bk[1], ba.shape, jnp.float32)
    bb = 0.1 * jax.random.normal(bk[2], bb.shape, jnp.float32)
    bc = 0.1 * jax.random.normal(bk[3], bc.shape, jnp.float32)
    bcls = 0.1 * jax.random.normal(bk[4], bcls.shape, jnp.float32)
    params = (wfc, bfc, wa, ba, wb, bb, wc, bc, wcls, bcls)

    # 1) f32, per-class mask, multi-tile (block_n=128) + padding path.
    ref_logits1, ref_A1 = _reference_forward(x, mask_a, params)
    logits1, A1 = jax.block_until_ready(
        attn_net_gated_forward(x, mask_a, params, block_n=128))
    assert logits1.shape == (B, C, C) and A1.shape == (B, C, N)
    assert jnp.allclose(logits1, ref_logits1, atol=1e-4, rtol=1e-4)
    assert jnp.allclose(A1, ref_A1, atol=3e-5, rtol=1e-4)

    # 2) f32, compact per-instance mask, default block_n (single padded tile).
    ref_logits2, ref_A2 = _reference_forward(x, mask_b_full, params)
    logits2, A2 = jax.block_until_ready(
        attn_net_gated_forward(x, mask_b_inst, params))
    assert jnp.allclose(logits2, ref_logits2, atol=1e-4, rtol=1e-4)
    assert jnp.allclose(A2, ref_A2, atol=3e-5, rtol=1e-4)

    # 3) bf16 matmul-input path (x tile cast in-kernel; bf16 MXU on v5e/v6e/v7x).
    logits3, A3 = jax.block_until_ready(
        attn_net_gated_forward(x, mask_a, params, block_n=128,
                               compute_dtype=jnp.bfloat16))
    assert jnp.allclose(logits3, ref_logits1, atol=1e-1, rtol=1e-1)
    assert jnp.allclose(A3, ref_A1, atol=1e-2, rtol=2e-1)

    print("KERNEL_OK")
</pallas_src>

<mosaic_0001>
module attributes {stable_mosaic.version = 11 : i64} {
  func.func @_attn_gated_kernel(%arg0: i32, %arg1: i32, %arg2: memref<1x128x128xf32, #tpu.memory_space<vmem>>, %arg3: memref<1x3x128xf32, #tpu.memory_space<vmem>>, %arg4: memref<128x128xf32, #tpu.memory_space<vmem>>, %arg5: memref<1x128xf32, #tpu.memory_space<vmem>>, %arg6: memref<128x256xf32, #tpu.memory_space<vmem>>, %arg7: memref<1x256xf32, #tpu.memory_space<vmem>>, %arg8: memref<128x3xf32, #tpu.memory_space<vmem>>, %arg9: memref<3x1xf32, #tpu.memory_space<vmem>>, %arg10: memref<128x3xf32, #tpu.memory_space<vmem>>, %arg11: memref<1x3xf32, #tpu.memory_space<vmem>>, %arg12: memref<1x3x3xf32, #tpu.memory_space<vmem>>, %arg13: memref<1x3x384xf32, #tpu.memory_space<vmem>>, %arg14: memref<3x1xf32, #tpu.memory_space<vmem>>, %arg15: memref<3x1xf32, #tpu.memory_space<vmem>>, %arg16: memref<3x128xf32, #tpu.memory_space<vmem>>, %arg17: memref<3x3x1xf32, #tpu.memory_space<vmem>>) attributes {dimension_semantics = [#tpu.dimension_semantics<parallel>, #tpu.dimension_semantics<arbitrary>], iteration_bounds = array<i64: 2, 3>, scalar_prefetch = 0 : i64, scratch_operands = 4 : i64, tpu.core_type = #tpu.core_type<tc>, window_params = [{transform_indices = @transform_0, window_bounds = array<i64: 1, 128, 128>}, {transform_indices = @transform_1, window_bounds = array<i64: 1, 3, 128>}, {pipeline_mode = #tpu.pipeline_mode<synchronous>, transform_indices = @transform_2, window_bounds = array<i64: 128, 128>}, {pipeline_mode = #tpu.pipeline_mode<synchronous>, transform_indices = @transform_3, window_bounds = array<i64: 1, 128>}, {pipeline_mode = #tpu.pipeline_mode<synchronous>, transform_indices = @transform_4, window_bounds = array<i64: 128, 256>}, {pipeline_mode = #tpu.pipeline_mode<synchronous>, transform_indices = @transform_5, window_bounds = array<i64: 1, 256>}, {pipeline_mode = #tpu.pipeline_mode<synchronous>, transform_indices = @transform_6, window_bounds = array<i64: 128, 3>}, {pipeline_mode = #tpu.pipeline_mode<synchronous>, transform_indices = @transform_7, window_bounds = array<i64: 3, 1>}, {pipeline_mode = #tpu.pipeline_mode<synchronous>, transform_indices = @transform_8, window_bounds = array<i64: 128, 3>}, {pipeline_mode = #tpu.pipeline_mode<synchronous>, transform_indices = @transform_9, window_bounds = array<i64: 1, 3>}, {transform_indices = @transform_10, window_bounds = array<i64: 1, 3, 3>}, {transform_indices = @transform_11, window_bounds = array<i64: 1, 3, 384>}]} {
    %c0_i32 = arith.constant 0 : i32
    %0 = arith.cmpi eq, %arg1, %c0_i32 : i32
    %1 = arith.extui %0 : i1 to i32
    %c0_i32_0 = arith.constant 0 : i32
    %2 = arith.cmpi ne, %1, %c0_i32_0 : i32
    scf.if %2 {
      %cst_44 = arith.constant 0xFF800000 : f32
      %71 = vector.broadcast %cst_44 : f32 to vector<3x1xf32>
      %c0_45 = arith.constant 0 : index
      %c0_46 = arith.constant 0 : index
      %72 = vector.load %arg14[%c0_45, %c0_46] : memref<3x1xf32, #tpu.memory_space<vmem>>, vector<3x1xf32>
      tpu.vector_store %arg14[%c0_45, %c0_46], %71 {strides = array<i32>} : memref<3x1xf32, #tpu.memory_space<vmem>>, vector<3x1xf32>,
      %cst_47 = arith.constant 0.000000e+00 : f32
      %73 = vector.broadcast %cst_47 : f32 to vector<3x1xf32>
      %c0_48 = arith.constant 0 : index
      %c0_49 = arith.constant 0 : index
      %74 = vector.load %arg15[%c0_48, %c0_49] : memref<3x1xf32, #tpu.memory_space<vmem>>, vector<3x1xf32>
      tpu.vector_store %arg15[%c0_48, %c0_49], %73 {strides = array<i32>} : memref<3x1xf32, #tpu.memory_space<vmem>>, vector<3x1xf32>,
      %cst_50 = arith.constant 0.000000e+00 : f32
      %75 = vector.broadcast %cst_50 : f32 to vector<3x128xf32>
      %c0_51 = arith.constant 0 : index
      %c0_52 = arith.constant 0 : index
      %76 = vector.load %arg16[%c0_51, %c0_52] : memref<3x128xf32, #tpu.memory_space<vmem>>, vector<3x128xf32>
      tpu.vector_store %arg16[%c0_51, %c0_52], %75 {strides = array<i32>} : memref<3x128xf32, #tpu.memory_space<vmem>>, vector<3x128xf32>,
    } else {
    }
    %c0 = arith.constant 0 : index
    %c0_1 = arith.constant 0 : index
    %c0_2 = arith.constant 0 : index
    %3 = vector.load %arg2[%c0, %c0_1, %c0_2] : memref<1x128x128xf32, #tpu.memory_space<vmem>>, vector<1x128x128xf32>
    %4 = vector.shape_cast %3 : vector<1x128x128xf32> to vector<128x128xf32>
    %c0_3 = arith.constant 0 : index
    %c0_4 = arith.constant 0 : index
    %5 = vector.load %arg4[%c0_3, %c0_4] : memref<128x128xf32, #tpu.memory_space<vmem>>, vector<128x128xf32>
    %cst = arith.constant dense<0.000000e+00> : vector<128x128xf32>
    %6 = tpu.matmul %4, %5, %cst {dimension_numbers = #tpu.dot_dimension_numbers<[1], [0], [0], [1], [0, 0, 1, 1], [], []>} : vector<128x128xf32>, vector<128x128xf32>, vector<128x128xf32> -> vector<128x128xf32>
    %c0_5 = arith.constant 0 : index
    %c0_6 = arith.constant 0 : index
    %7 = vector.load %arg5[%c0_5, %c0_6] : memref<1x128xf32, #tpu.memory_space<vmem>>, vector<1x128xf32>
    %8 = vector.broadcast %7 : vector<1x128xf32> to vector<128x128xf32>
    %9 = arith.addf %6, %8 : vector<128x128xf32>
    %cst_7 = arith.constant 0.000000e+00 : f32
    %10 = vector.broadcast %cst_7 : f32 to vector<128x128xf32>
    %11 = arith.maximumf %9, %10 : vector<128x128xf32>
    %c0_8 = arith.constant 0 : index
    %c0_9 = arith.constant 0 : index
    %12 = vector.load %arg6[%c0_8, %c0_9] : memref<128x256xf32, #tpu.memory_space<vmem>>, vector<128x256xf32>
    %cst_10 = arith.constant dense<0.000000e+00> : vector<128x256xf32>
    %13 = tpu.matmul %11, %12, %cst_10 {dimension_numbers = #tpu.dot_dimension_numbers<[1], [0], [0], [1], [0, 0, 1, 1], [], []>} : vector<128x128xf32>, vector<128x256xf32>, vector<128x256xf32> -> vector<128x256xf32>
    %c0_11 = arith.constant 0 : index
    %c0_12 = arith.constant 0 : index
    %14 = vector.load %arg7[%c0_11, %c0_12] : memref<1x256xf32, #tpu.memory_space<vmem>>, vector<1x256xf32>
    %15 = vector.broadcast %14 : vector<1x256xf32> to vector<128x256xf32>
    %16 = arith.addf %13, %15 : vector<128x256xf32>
    %17 = vector.extract_strided_slice %16 {offsets = [0, 0], sizes = [128, 128], strides = [1, 1]} : vector<128x256xf32> to vector<128x128xf32>
    %18 = math.tanh %17 : vector<128x128xf32>
    %19 = vector.extract_strided_slice %16 {offsets = [0, 128], sizes = [128, 128], strides = [1, 1]} : vector<128x256xf32> to vector<128x128xf32>
    %cst_13 = arith.constant 5.000000e-01 : f32
    %20 = vector.broadcast %cst_13 : f32 to vector<128x128xf32>
    %21 = arith.mulf %20, %19 : vector<128x128xf32>
    %22 = math.tanh %21 : vector<128x128xf32>
    %cst_14 = arith.constant 5.000000e-01 : f32
    %23 = vector.broadcast %cst_14 : f32 to vector<128x128xf32>
    %24 = arith.mulf %23, %22 : vector<128x128xf32>
    %cst_15 = arith.constant 5.000000e-01 : f32
    %25 = vector.broadcast %cst_15 : f32 to vector<128x128xf32>
    %26 = arith.addf %24, %25 : vector<128x128xf32>
    %27 = arith.mulf %18, %26 : vector<128x128xf32>
    %c0_16 = arith.constant 0 : index
    %c0_17 = arith.constant 0 : index
    %28 = vector.load %arg8[%c0_16, %c0_17] : memref<128x3xf32, #tpu.memory_space<vmem>>, vector<128x3xf32>
    %cst_18 = arith.constant dense<0.000000e+00> : vector<3x128xf32>
    %29 = tpu.matmul %28, %27, %cst_18 {dimension_numbers = #tpu.dot_dimension_numbers<[0], [1], [1], [0], [0, 1, 1, 0], [], []>} : vector<128x3xf32>, vector<128x128xf32>, vector<3x128xf32> -> vector<3x128xf32>
    %c0_19 = arith.constant 0 : index
    %c0_20 = arith.constant 0 : index
    %30 = vector.load %arg9[%c0_19, %c0_20] : memref<3x1xf32, #tpu.memory_space<vmem>>, vector<3x1xf32>
    %31 = vector.broadcast %30 : vector<3x1xf32> to vector<3x128xf32>
    %32 = arith.addf %29, %31 : vector<3x128xf32>
    %c0_21 = arith.constant 0 : index
    %c0_22 = arith.constant 0 : index
    %c0_23 = arith.constant 0 : index
    %33 = vector.load %arg3[%c0_21, %c0_22, %c0_23] : memref<1x3x128xf32, #tpu.memory_space<vmem>>, vector<1x3x128xf32>
    %34 = vector.shape_cast %33 : vector<1x3x128xf32> to vector<3x128xf32>
    %35 = arith.addf %32, %34 : vector<3x128xf32>
    %c0_24 = arith.constant 0 : index
    %c0_25 = arith.constant 0 : index
    %36 = vector.load %arg14[%c0_24, %c0_25] : memref<3x1xf32, #tpu.memory_space<vmem>>, vector<3x1xf32>
    %cst_26 = arith.constant dense<0xFF800000> : vector<3xf32>
    %37 = vector.multi_reduction <maximumf>, %35, %cst_26 [1] : vector<3x128xf32> to vector<3xf32>
    %38 = vector.shape_cast %37 : vector<3xf32> to vector<3x1xf32>
    %39 = arith.maximumf %36, %38 : vector<3x1xf32>
    %40 = arith.subf %36, %39 : vector<3x1xf32>
    %41 = math.exp %40 : vector<3x1xf32>
    %42 = vector.broadcast %39 : vector<3x1xf32> to vector<3x128xf32>
    %43 = arith.subf %35, %42 : vector<3x128xf32>
    %44 = math.exp %43 : vector<3x128xf32>
    %c0_27 = arith.constant 0 : index
    %c0_28 = arith.constant 0 : index
    %45 = vector.load %arg15[%c0_27, %c0_28] : memref<3x1xf32, #tpu.memory_space<vmem>>, vector<3x1xf32>
    %46 = arith.mulf %41, %45 : vector<3x1xf32>
    %cst_29 = arith.constant dense<0.000000e+00> : vector<3xf32>
    %47 = vector.multi_reduction <add>, %44, %cst_29 [1] : vector<3x128xf32> to vector<3xf32>
    %48 = vector.shape_cast %47 : vector<3xf32> to vector<3x1xf32>
    %49 = arith.addf %46, %48 : vector<3x1xf32>
    %c0_30 = arith.constant 0 : index
    %c0_31 = arith.constant 0 : index
    %50 = vector.load %arg15[%c0_30, %c0_31] : memref<3x1xf32, #tpu.memory_space<vmem>>, vector<3x1xf32>
    tpu.vector_store %arg15[%c0_30, %c0_31], %49 {strides = array<i32>} : memref<3x1xf32, #tpu.memory_space<vmem>>, vector<3x1xf32>,
    %c0_32 = arith.constant 0 : index
    %c0_33 = arith.constant 0 : index
    %51 = vector.load %arg16[%c0_32, %c0_33] : memref<3x128xf32, #tpu.memory_space<vmem>>, vector<3x128xf32>
    %52 = vector.broadcast %41 : vector<3x1xf32> to vector<3x128xf32>
    %53 = arith.mulf %52, %51 : vector<3x128xf32>
    %cst_34 = arith.constant dense<0.000000e+00> : vector<3x128xf32>
    %54 = tpu.matmul %44, %11, %cst_34 {dimension_numbers = #tpu.dot_dimension_numbers<[1], [0], [0], [1], [0, 0, 1, 1], [], []>} : vector<3x128xf32>, vector<128x128xf32>, vector<3x128xf32> -> vector<3x128xf32>
    %55 = arith.addf %53, %54 : vector<3x128xf32>
    %c0_35 = arith.constant 0 : index
    %c0_36 = arith.constant 0 : index
    %56 = vector.load %arg16[%c0_35, %c0_36] : memref<3x128xf32, #tpu.memory_space<vmem>>, vector<3x128xf32>
    tpu.vector_store %arg16[%c0_35, %c0_36], %55 {strides = array<i32>} : memref<3x128xf32, #tpu.memory_space<vmem>>, vector<3x128xf32>,
    %c0_37 = arith.constant 0 : index
    %c0_38 = arith.constant 0 : index
    %57 = vector.load %arg14[%c0_37, %c0_38] : memref<3x1xf32, #tpu.memory_space<vmem>>, vector<3x1xf32>
    tpu.vector_store %arg14[%c0_37, %c0_38], %39 {strides = array<i32>} : memref<3x1xf32, #tpu.memory_space<vmem>>, vector<3x1xf32>,
    %58 = arith.index_cast %arg1 : i32 to index
    %c0_39 = arith.constant 0 : index
    %c0_40 = arith.constant 0 : index
    %59 = vector.load %arg17[%58, %c0_39, %c0_40] : memref<3x3x1xf32, #tpu.memory_space<vmem>>, vector<1x3x1xf32>
    %60 = vector.shape_cast %59 : vector<1x3x1xf32> to vector<3x1xf32>
    %61 = vector.shape_cast %39 : vector<3x1xf32> to vector<1x3x1xf32>
    tpu.vector_store %arg17[%58, %c0_39, %c0_40], %61 {strides = array<i32>} : memref<3x3x1xf32, #tpu.memory_space<vmem>>, vector<1x3x1xf32>,
    %c128_i32 = arith.constant 128 : i32
    %62 = arith.muli %arg1, %c128_i32 : i32
    %63 = tpu.assume_multiple %62, 128 : i32
    %c0_41 = arith.constant 0 : index
    %c0_42 = arith.constant 0 : index
    %64 = arith.index_cast %63 : i32 to index
    %65 = vector.load %arg13[%c0_41, %c0_42, %64] : memref<1x3x384xf32, #tpu.memory_space<vmem>>, vector<1x3x128xf32>
    %66 = vector.shape_cast %65 : vector<1x3x128xf32> to vector<3x128xf32>
    %67 = vector.shape_cast %44 : vector<3x128xf32> to vector<1x3x128xf32>
    tpu.vector_store %arg13[%c0_41, %c0_42, %64], %67 {strides = array<i32>} : memref<1x3x384xf32, #tpu.memory_space<vmem>>, vector<1x3x128xf32>,
    %c2_i32 = arith.constant 2 : i32
    %68 = arith.cmpi eq, %arg1, %c2_i32 : i32
    %69 = arith.extui %68 : i1 to i32
    %c0_i32_43 = arith.constant 0 : i32
    %70 = arith.cmpi ne, %69, %c0_i32_43 : i32
    scf.if %70 {
      %c0_44 = arith.constant 0 : index
      %c0_45 = arith.constant 0 : index
      %71 = vector.load %arg14[%c0_44, %c0_45] : memref<3x1xf32, #tpu.memory_space<vmem>>, vector<3x1xf32>
      %c0_46 = arith.constant 0 : index
      %c0_47 = arith.constant 0 : index
      %72 = vector.load %arg15[%c0_46, %c0_47] : memref<3x1xf32, #tpu.memory_space<vmem>>, vector<3x1xf32>
      %cst_48 = arith.constant 1.000000e+00 : f32
      %73 = vector.broadcast %cst_48 : f32 to vector<3x1xf32>
      %74 = arith.divf %73, %72 : vector<3x1xf32>
      %c0_49 = arith.constant 0 : index
      %c0_50 = arith.constant 0 : index
      %c0_51 = arith.constant 0 : index
      %75 = vector.load %arg17[%c0_49, %c0_50, %c0_51] : memref<3x3x1xf32, #tpu.memory_space<vmem>>, vector<1x3x1xf32>
      %76 = vector.shape_cast %75 : vector<1x3x1xf32> to vector<3x1xf32>
      %77 = arith.subf %76, %71 : vector<3x1xf32>
      %78 = math.exp %77 : vector<3x1xf32>
      %79 = arith.mulf %78, %74 : vector<3x1xf32>
      %c0_52 = arith.constant 0 : index
      %c0_53 = arith.constant 0 : index
      %c0_54 = arith.constant 0 : index
      %80 = vector.load %arg13[%c0_52, %c0_53, %c0_54] : memref<1x3x384xf32, #tpu.memory_space<vmem>>, vector<1x3x128xf32>
      %81 = vector.shape_cast %80 : vector<1x3x128xf32> to vector<3x128xf32>
      %82 = vector.broadcast %79 : vector<3x1xf32> to vector<3x128xf32>
      %83 = arith.mulf %81, %82 : vector<3x128xf32>
      %c0_55 = arith.constant 0 : index
      %c0_56 = arith.constant 0 : index
      %c0_57 = arith.constant 0 : index
      %84 = vector.load %arg13[%c0_55, %c0_56, %c0_57] : memref<1x3x384xf32, #tpu.memory_space<vmem>>, vector<1x3x128xf32>
      %85 = vector.shape_cast %84 : vector<1x3x128xf32> to vector<3x128xf32>
      %86 = vector.shape_cast %83 : vector<3x128xf32> to vector<1x3x128xf32>
      tpu.vector_store %arg13[%c0_55, %c0_56, %c0_57], %86 {strides = array<i32>} : memref<1x3x384xf32, #tpu.memory_space<vmem>>, vector<1x3x128xf32>,
      %c1 = arith.constant 1 : index
      %c0_58 = arith.constant 0 : index
      %c0_59 = arith.constant 0 : index
      %87 = vector.load %arg17[%c1, %c0_58, %c0_59] : memref<3x3x1xf32, #tpu.memory_space<vmem>>, vector<1x3x1xf32>
      %88 = vector.shape_cast %87 : vector<1x3x1xf32> to vector<3x1xf32>
      %89 = arith.subf %88, %71 : vector<3x1xf32>
      %90 = math.exp %89 : vector<3x1xf32>
      %91 = arith.mulf %90, %74 : vector<3x1xf32>
      %c0_60 = arith.constant 0 : index
      %c0_61 = arith.constant 0 : index
      %c128 = arith.constant 128 : index
      %92 = vector.load %arg13[%c0_60, %c0_61, %c128] : memref<1x3x384xf32, #tpu.memory_space<vmem>>, vector<1x3x128xf32>
      %93 = vector.shape_cast %92 : vector<1x3x128xf32> to vector<3x128xf32>
      %94 = vector.broadcast %91 : vector<3x1xf32> to vector<3x128xf32>
      %95 = arith.mulf %93, %94 : vector<3x128xf32>
      %c0_62 = arith.constant 0 : index
      %c0_63 = arith.constant 0 : index
      %c128_64 = arith.constant 128 : index
      %96 = vector.load %arg13[%c0_62, %c0_63, %c128_64] : memref<1x3x384xf32, #tpu.memory_space<vmem>>, vector<1x3x128xf32>
      %97 = vector.shape_cast %96 : vector<1x3x128xf32> to vector<3x128xf32>
      %98 = vector.shape_cast %95 : vector<3x128xf32> to vector<1x3x128xf32>
      tpu.vector_store %arg13[%c0_62, %c0_63, %c128_64], %98 {strides = array<i32>} : memref<1x3x384xf32, #tpu.memory_space<vmem>>, vector<1x3x128xf32>,
      %c2 = arith.constant 2 : index
      %c0_65 = arith.constant 0 : index
      %c0_66 = arith.constant 0 : index
      %99 = vector.load %arg17[%c2, %c0_65, %c0_66] : memref<3x3x1xf32, #tpu.memory_space<vmem>>, vector<1x3x1xf32>
      %100 = vector.shape_cast %99 : vector<1x3x1xf32> to vector<3x1xf32>
      %101 = arith.subf %100, %71 : vector<3x1xf32>
      %102 = math.exp %101 : vector<3x1xf32>
      %103 = arith.mulf %102, %74 : vector<3x1xf32>
      %c0_67 = arith.constant 0 : index
      %c0_68 = arith.constant 0 : index
      %c256 = arith.constant 256 : index
      %104 = vector.load %arg13[%c0_67, %c0_68, %c256] : memref<1x3x384xf32, #tpu.memory_space<vmem>>, vector<1x3x128xf32>
      %105 = vector.shape_cast %104 : vector<1x3x128xf32> to vector<3x128xf32>
      %106 = vector.broadcast %103 : vector<3x1xf32> to vector<3x128xf32>
      %107 = arith.mulf %105, %106 : vector<3x128xf32>
      %c0_69 = arith.constant 0 : index
      %c0_70 = arith.constant 0 : index
      %c256_71 = arith.constant 256 : index
      %108 = vector.load %arg13[%c0_69, %c0_70, %c256_71] : memref<1x3x384xf32, #tpu.memory_space<vmem>>, vector<1x3x128xf32>
      %109 = vector.shape_cast %108 : vector<1x3x128xf32> to vector<3x128xf32>
      %110 = vector.shape_cast %107 : vector<3x128xf32> to vector<1x3x128xf32>
      tpu.vector_store %arg13[%c0_69, %c0_70, %c256_71], %110 {strides = array<i32>} : memref<1x3x384xf32, #tpu.memory_space<vmem>>, vector<1x3x128xf32>,
      %c0_72 = arith.constant 0 : index
      %c0_73 = arith.constant 0 : index
      %111 = vector.load %arg16[%c0_72, %c0_73] : memref<3x128xf32, #tpu.memory_space<vmem>>, vector<3x128xf32>
      %112 = vector.broadcast %74 : vector<3x1xf32> to vector<3x128xf32>
      %113 = arith.mulf %111, %112 : vector<3x128xf32>
      %c0_74 = arith.constant 0 : index
      %c0_75 = arith.constant 0 : index
      %114 = vector.load %arg10[%c0_74, %c0_75] : memref<128x3xf32, #tpu.memory_space<vmem>>, vector<128x3xf32>
      %cst_76 = arith.constant dense<0.000000e+00> : vector<3x3xf32>
      %115 = tpu.matmul %113, %114, %cst_76 {dimension_numbers = #tpu.dot_dimension_numbers<[1], [0], [0], [1], [0, 0, 1, 1], [], []>} : vector<3x128xf32>, vector<128x3xf32>, vector<3x3xf32> -> vector<3x3xf32>
      %c0_77 = arith.constant 0 : index
      %c0_78 = arith.constant 0 : index
      %116 = vector.load %arg11[%c0_77, %c0_78] : memref<1x3xf32, #tpu.memory_space<vmem>>, vector<1x3xf32>
      %117 = vector.broadcast %116 : vector<1x3xf32> to vector<3x3xf32>
      %118 = arith.addf %115, %117 : vector<3x3xf32>
      %c0_79 = arith.constant 0 : index
      %c0_80 = arith.constant 0 : index
      %c0_81 = arith.constant 0 : index
      %119 = vector.load %arg12[%c0_79, %c0_80, %c0_81] : memref<1x3x3xf32, #tpu.memory_space<vmem>>, vector<1x3x3xf32>
      %120 = vector.shape_cast %119 : vector<1x3x3xf32> to vector<3x3xf32>
      %121 = vector.shape_cast %118 : vector<3x3xf32> to vector<1x3x3xf32>
      tpu.vector_store %arg12[%c0_79, %c0_80, %c0_81], %121 {strides = array<i32>} : memref<1x3x3xf32, #tpu.memory_space<vmem>>, vector<1x3x3xf32>,
    } else {
    }
    return
  }
  func.func @transform_0(%arg0: i32, %arg1: i32) -> (i32, i32, i32) {
    %c0_i32 = arith.constant 0 : i32
    %c0_i32_0 = arith.constant 0 : i32
    return %arg0, %arg1, %c0_i32 : i32, i32, i32
  }
  func.func @transform_1(%arg0: i32, %arg1: i32) -> (i32, i32, i32) {
    %c0_i32 = arith.constant 0 : i32
    %c0_i32_0 = arith.constant 0 : i32
    return %arg0, %c0_i32, %arg1 : i32, i32, i32
  }
  func.func @transform_2(%arg0: i32, %arg1: i32) -> (i32, i32) {
    %c0_i32 = arith.constant 0 : i32
    %c0_i32_0 = arith.constant 0 : i32
    %c0_i32_1 = arith.constant 0 : i32
    return %c0_i32, %c0_i32_0 : i32, i32
  }
  func.func @transform_3(%arg0: i32, %arg1: i32) -> (i32, i32) {
    %c0_i32 = arith.constant 0 : i32
    %c0_i32_0 = arith.constant 0 : i32
    %c0_i32_1 = arith.constant 0 : i32
    return %c0_i32, %c0_i32_0 : i32, i32
  }
  func.func @transform_4(%arg0: i32, %arg1: i32) -> (i32, i32) {
    %c0_i32 = arith.constant 0 : i32
    %c0_i32_0 = arith.constant 0 : i32
    %c0_i32_1 = arith.constant 0 : i32
    return %c0_i32, %c0_i32_0 : i32, i32
  }
  func.func @transform_5(%arg0: i32, %arg1: i32) -> (i32, i32) {
    %c0_i32 = arith.constant 0 : i32
    %c0_i32_0 = arith.constant 0 : i32
    %c0_i32_1 = arith.constant 0 : i32
    return %c0_i32, %c0_i32_0 : i32, i32
  }
  func.func @transform_6(%arg0: i32, %arg1: i32) -> (i32, i32) {
    %c0_i32 = arith.constant 0 : i32
    %c0_i32_0 = arith.constant 0 : i32
    %c0_i32_1 = arith.constant 0 : i32
    return %c0_i32, %c0_i32_0 : i32, i32
  }
  func.func @transform_7(%arg0: i32, %arg1: i32) -> (i32, i32) {
    %c0_i32 = arith.constant 0 : i32
    %c0_i32_0 = arith.constant 0 : i32
    %c0_i32_1 = arith.constant 0 : i32
    return %c0_i32, %c0_i32_0 : i32, i32
  }
  func.func @transform_8(%arg0: i32, %arg1: i32) -> (i32, i32) {
    %c0_i32 = arith.constant 0 : i32
    %c0_i32_0 = arith.constant 0 : i32
    %c0_i32_1 = arith.constant 0 : i32
    return %c0_i32, %c0_i32_0 : i32, i32
  }
  func.func @transform_9(%arg0: i32, %arg1: i32) -> (i32, i32) {
    %c0_i32 = arith.constant 0 : i32
    %c0_i32_0 = arith.constant 0 : i32
    %c0_i32_1 = arith.constant 0 : i32
    return %c0_i32, %c0_i32_0 : i32, i32
  }
  func.func @transform_10(%arg0: i32, %arg1: i32) -> (i32, i32, i32) {
    %c0_i32 = arith.constant 0 : i32
    %c0_i32_0 = arith.constant 0 : i32
    %c0_i32_1 = arith.constant 0 : i32
    return %arg0, %c0_i32, %c0_i32_0 : i32, i32, i32
  }
  func.func @transform_11(%arg0: i32, %arg1: i32) -> (i32, i32, i32) {
    %c0_i32 = arith.constant 0 : i32
    %c0_i32_0 = arith.constant 0 : i32
    %c0_i32_1 = arith.constant 0 : i32
    return %arg0, %c0_i32, %c0_i32_0 : i32, i32, i32
  }
}

</mosaic_0001>

<llo_original>
// kernel: tpu_custom_call.1
$region0: #{tpu_custom_call.1}
  #allocation0 [shape = 'u32[]', space=smem, size = 0x4, offset = 0x4, fixed_abs, tag = 'smem constant byte address 0x4 - core index']
  #allocation1 [shape = 'u32[144,128]{1,0:T(1,128)}', space=vmem, size = 0x12000, scoped, tag = 'internal scratch']
  #allocation2 [shape = 'f32[3,1]{1,0:T(4,128)}', space=vmem, size = 0x800, scoped, tag = 'scratch operand']
  #allocation3 [shape = 'f32[3,1]{1,0:T(4,128)}', space=vmem, size = 0x800, scoped, tag = 'scratch operand']
  #allocation4 [shape = 'f32[3,128]{1,0:T(4,128)}', space=vmem, size = 0x800, scoped, tag = 'scratch operand']
  #allocation5 [shape = 'f32[3,3,1]{2,1,0:T(4,128)}', space=vmem, size = 0x1800, scoped, tag = 'scratch operand']
  %s0 = inlined_call_operand.hbm [shape: f32[2,384,128], index: 0, kind: input, shape index: {}]
  %s1 = inlined_call_operand.vmem [shape: f32[2,3,384], index: 1, kind: input, shape index: {}]
  %s2 = inlined_call_operand.hbm [shape: f32[128,128], index: 2, kind: input, shape index: {}]
  %s3 = inlined_call_operand.vmem [shape: f32[1,128], index: 3, kind: input, shape index: {}]
  %s4 = inlined_call_operand.vmem [shape: f32[128,256], index: 4, kind: input, shape index: {}]
  %s5 = inlined_call_operand.vmem [shape: f32[1,256], index: 5, kind: input, shape index: {}]
  %s6 = inlined_call_operand.vmem [shape: f32[128,3], index: 6, kind: input, shape index: {}]
  %s7 = inlined_call_operand.vmem [shape: f32[3,1], index: 7, kind: input, shape index: {}]
  %s8 = inlined_call_operand.vmem [shape: f32[128,3], index: 8, kind: input, shape index: {}]
  %s9 = inlined_call_operand.vmem [shape: f32[1,3], index: 9, kind: input, shape index: {}]
  %s10 = inlined_call_operand.vmem [shape: f32[2,3,3], index: 10, kind: output, shape index: {0}]
  %s11 = inlined_call_operand.vmem [shape: f32[2,3,384], index: 11, kind: output, shape index: {1}]
  %12 = xla_tuple %s10, %s11
  %s13 = sld [smem:[#allocation0]]
  $region97: #{tpu_custom_call.1} parent=0
    _
  %s15 = ssub.s32 1, %s13
  %s16 = scalar_select 0, %s15, %s13
  $region1: #{tpu_custom_call.1} parent=0
    #allocation6 [shape = 'u8[131072]{0}', space=vmem, size = 0x20000, scoped, tag = 'input window, operand 0']
    #allocation7 [shape = 's32[2]{0}', space=sflag, size = 0x8, scoped, tag = 'scoped memory for tpu_custom_call.1']
    #allocation8 [shape = 'u8[65536]{0}', space=vmem, size = 0x10000, scoped, tag = 'input window, operand 2, single buffered']
    #allocation9 [shape = 's32[1]{0}', space=sflag, size = 0x4, scoped, tag = 'scoped memory for tpu_custom_call.1']
    %17 = vsyncpa [#allocation7], 0
    %s18 = scalar_lea.sflag [#allocation7], 1
    %19 = vsyncpa %s18, 0
    %20 = vsyncpa [#allocation9], 0
    loop: start=0, step=1, limit=8
    $region2: #{tpu_custom_call.1} parent=1 // loop_pre_header
      _
    $region3: #{tpu_custom_call.1} parent=1 // loop_header
      %s22 = sphi 0, %s26
      %p23 = scmp.ge.s32.totalorder %s22, 8
      %s29 = sphi 0, %s41
      %s30 = sphi 0, %s37
      %s31 = sphi 0, %s29
      %s32 = sphi 0, %s30
      %s33 = sphi 0, %s31
      %s34 = sphi 0, %s32
      %s46 = sphi 0, %s48
      %s49 = sphi 0, %s46
      %s50 = sphi 0, %s49
      %s66 = sphi 0, %s50
      %s74 = sphi 0, %s76
      %s77 = sphi 0, %s74
      %s78 = sphi 0, %s77
      %s94 = sphi 0, %s78
      %s98 = sphi 0, %s98
      %s100 = sphi 0, %s98
      %s101 = sphi 0, %s100
      %s115 = sphi 0, %s101
      %s119 = sphi 0, %s119
      %s121 = sphi 0, %s119
      %s122 = sphi 0, %s121
      %s136 = sphi 0, %s122
      %s140 = sphi 0, %s140
      %s142 = sphi 0, %s140
      %s143 = sphi 0, %s142
      %s157 = sphi 0, %s143
      %s161 = sphi 0, %s161
      %s163 = sphi 0, %s161
      %s164 = sphi 0, %s163
      %s178 = sphi 0, %s164
      %s182 = sphi 0, %s182
      %s184 = sphi 0, %s182
      %s185 = sphi 0, %s184
      %s199 = sphi 0, %s185
      %s203 = sphi 0, %s203
      %s205 = sphi 0, %s203
      %s206 = sphi 0, %s205
      %s220 = sphi 0, %s206
      %s224 = sphi 0, %s224
      %s226 = sphi 0, %s224
      %s227 = sphi 0, %s226
      %s241 = sphi 0, %s227
      %s245 = sphi 0, %s245
      %s247 = sphi 0, %s245
      %s248 = sphi 0, %s247
      %s262 = sphi 0, %s248
      %s268 = sphi 0, %s270
      %s271 = sphi 0, %s268
      %s272 = sphi 0, %s271
      %s288 = sphi 0, %s272
      %s294 = sphi 0, %s296
      %s297 = sphi 0, %s294
      %s298 = sphi 0, %s297
      %s314 = sphi 0, %s298
    $region4: #{tpu_custom_call.1} parent=1 // loop_header_branch
      %25 = sbr.rel (%p23) target = $region8
    $region5: #{tpu_custom_call.1} parent=1 // loop_body
      %s27 = ssub.s32 %s22, 1
      %s28 = ssub.s32 %s22, 2
      %s35 = sadd.s32 1, %s30
      %p36 = scmp.ge.s32.totalorder %s35, 3
      %s37 = scalar_select %p36, 0, %s35
      %s38 = sadd.s32 1, %s29
      %s39 = scalar_select %p36, %s38, %s29
      %p40 = scmp.ge.s32.totalorder %s39, 2
      %s41 = scalar_select %p40, 0, %s39
      %s42 = ssub.s32 %s29, %s41
      %s43 = ssub.s32 %s30, %s37
      %s44 = sor.u32 %s42, %s43
      %p45 = scmp.eq.s32.totalorder %s44, 0
      %s47 = sadd.s32 %s46, 1
      %s48 = scalar_select %p45, %s46, %s47
      %p51 = pneg %p45
      %p52 = scmp.eq.s32.totalorder %s22, 5
      %p53 = por %p51, %p52
      %p54 = scmp.ne.s32.totalorder %s46, %s49
      %p55 = scmp.eq.s32.totalorder %s22, 0
      %p56 = por %p54, %p55
      %p57 = scmp.ne.s32.totalorder %s46, %s49
      %p58 = scmp.eq.s32.totalorder %s27, 5
      %p59 = por %p57, %p58
      %p60 = scmp.ne.s32.totalorder %s49, %s50
      %p61 = scmp.eq.s32.totalorder %s27, 0
      %p62 = por %p60, %p61
      %p63 = scmp.ne.s32.totalorder %s49, %s50
      %p64 = scmp.eq.s32.totalorder %s28, 5
      %p65 = por %p63, %p64
      %p67 = scmp.ne.s32.totalorder %s50, %s66
      %p68 = scmp.eq.s32.totalorder %s28, 0
      %p69 = por %p67, %p68
      %s70 = ssub.s32 %s29, %s41
      %s71 = ssub.s32 %s30, %s37
      %s72 = sor.u32 %s70, %s71
      %p73 = scmp.eq.s32.totalorder %s72, 0
      %s75 = sadd.s32 %s74, 1
      %s76 = scalar_select %p73, %s74, %s75
      %p79 = pneg %p73
      %p80 = scmp.eq.s32.totalorder %s22, 5
      %p81 = por %p79, %p80
      %p82 = scmp.ne.s32.totalorder %s74, %s77
      %p83 = scmp.eq.s32.totalorder %s22, 0
      %p84 = por %p82, %p83
      %p85 = scmp.ne.s32.totalorder %s74, %s77
      %p86 = scmp.eq.s32.totalorder %s27, 5
      %p87 = por %p85, %p86
      %p88 = scmp.ne.s32.totalorder %s77, %s78
      %p89 = scmp.eq.s32.totalorder %s27, 0
      %p90 = por %p88, %p89
      %p91 = scmp.ne.s32.totalorder %s77, %s78
      %p92 = scmp.eq.s32.totalorder %s28, 5
      %p93 = por %p91, %p92
      %p95 = scmp.ne.s32.totalorder %s78, %s94
      %p96 = scmp.eq.s32.totalorder %s28, 0
      %p97 = por %p95, %p96
      %s99 = sadd.s32 %s98, 1
      %p102 = scmp.eq.s32.totalorder %s22, 5
      %p103 = scmp.ne.s32.totalorder %s98, %s100
      %p104 = scmp.eq.s32.totalorder %s22, 0
      %p105 = por %p103, %p104
      %p106 = scmp.ne.s32.totalorder %s98, %s100
      %p107 = scmp.eq.s32.totalorder %s27, 5
      %p108 = por %p106, %p107
      %p109 = scmp.ne.s32.totalorder %s100, %s101
      %p110 = scmp.eq.s32.totalorder %s27, 0
      %p111 = por %p109, %p110
      %p112 = scmp.ne.s32.totalorder %s100, %s101
      %p113 = scmp.eq.s32.totalorder %s28, 5
      %p114 = por %p112, %p113
      %p116 = scmp.ne.s32.totalorder %s101, %s115
      %p117 = scmp.eq.s32.totalorder %s28, 0
      %p118 = por %p116, %p117
      %s120 = sadd.s32 %s119, 1
      %p123 = scmp.eq.s32.totalorder %s22, 5
      %p124 = scmp.ne.s32.totalorder %s119, %s121
      %p125 = scmp.eq.s32.totalorder %s22, 0
      %p126 = por %p124, %p125
      %p127 = scmp.ne.s32.totalorder %s119, %s121
      %p128 = scmp.eq.s32.totalorder %s27, 5
      %p129 = por %p127, %p128
      %p130 = scmp.ne.s32.totalorder %s121, %s122
      %p131 = scmp.eq.s32.totalorder %s27, 0
      %p132 = por %p130, %p131
      %p133 = scmp.ne.s32.totalorder %s121, %s122
      %p134 = scmp.eq.s32.totalorder %s28, 5
      %p135 = por %p133, %p134
      %p137 = scmp.ne.s32.totalorder %s122, %s136
      %p138 = scmp.eq.s32.totalorder %s28, 0
      %p139 = por %p137, %p138
      %s141 = sadd.s32 %s140, 1
      %p144 = scmp.eq.s32.totalorder %s22, 5
      %p145 = scmp.ne.s32.totalorder %s140, %s142
      %p146 = scmp.eq.s32.totalorder %s22, 0
      %p147 = por %p145, %p146
      %p148 = scmp.ne.s32.totalorder %s140, %s142
      %p149 = scmp.eq.s32.totalorder %s27, 5
      %p150 = por %p148, %p149
      %p151 = scmp.ne.s32.totalorder %s142, %s143
      %p152 = scmp.eq.s32.totalorder %s27, 0
      %p153 = por %p151, %p152
      %p154 = scmp.ne.s32.totalorder %s142, %s143
      %p155 = scmp.eq.s32.totalorder %s28, 5
      %p156 = por %p154, %p155
      %p158 = scmp.ne.s32.totalorder %s143, %s157
      %p159 = scmp.eq.s32.totalorder %s28, 0
      %p160 = por %p158, %p159
      %s162 = sadd.s32 %s161, 1
      %p165 = scmp.eq.s32.totalorder %s22, 5
      %p166 = scmp.ne.s32.totalorder %s161, %s163
      %p167 = scmp.eq.s32.totalorder %s22, 0
      %p168 = por %p166, %p167
      %p169 = scmp.ne.s32.totalorder %s161, %s163
      %p170 = scmp.eq.s32.totalorder %s27, 5
      %p171 = por %p169, %p170
      %p172 = scmp.ne.s32.totalorder %s163, %s164
      %p173 = scmp.eq.s32.totalorder %s27, 0
      %p174 = por %p172, %p173
      %p175 = scmp.ne.s32.totalorder %s163, %s164
      %p176 = scmp.eq.s32.totalorder %s28, 5
      %p177 = por %p175, %p176
      %p179 = scmp.ne.s32.totalorder %s164, %s178
      %p180 = scmp.eq.s32.totalorder %s28, 0
      %p181 = por %p179, %p180
      %s183 = sadd.s32 %s182, 1
      %p186 = scmp.eq.s32.totalorder %s22, 5
      %p187 = scmp.ne.s32.totalorder %s182, %s184
      %p188 = scmp.eq.s32.totalorder %s22, 0
      %p189 = por %p187, %p188
      %p190 = scmp.ne.s32.totalorder %s182, %s184
      %p191 = scmp.eq.s32.totalorder %s27, 5
      %p192 = por %p190, %p191
      %p193 = scmp.ne.s32.totalorder %s184, %s185
      %p194 = scmp.eq.s32.totalorder %s27, 0
      %p195 = por %p193, %p194
      %p196 = scmp.ne.s32.totalorder %s184, %s185
      %p197 = scmp.eq.s32.totalorder %s28, 5
      %p198 = por %p196, %p197
      %p200 = scmp.ne.s32.totalorder %s185, %s199
      %p201 = scmp.eq.s32.totalorder %s28, 0
      %p202 = por %p200, %p201
      %s204 = sadd.s32 %s203, 1
      %p207 = scmp.eq.s32.totalorder %s22, 5
      %p208 = scmp.ne.s32.totalorder %s203, %s205
      %p209 = scmp.eq.s32.totalorder %s22, 0
      %p210 = por %p208, %p209
      %p211 = scmp.ne.s32.totalorder %s203, %s205
      %p212 = scmp.eq.s32.totalorder %s27, 5
      %p213 = por %p211, %p212
      %p214 = scmp.ne.s32.totalorder %s205, %s206
      %p215 = scmp.eq.s32.totalorder %s27, 0
      %p216 = por %p214, %p215
      %p217 = scmp.ne.s32.totalorder %s205, %s206
      %p218 = scmp.eq.s32.totalorder %s28, 5
      %p219 = por %p217, %p218
      %p221 = scmp.ne.s32.totalorder %s206, %s220
      %p222 = scmp.eq.s32.totalorder %s28, 0
      %p223 = por %p221, %p222
      %s225 = sadd.s32 %s224, 1
      %p228 = scmp.eq.s32.totalorder %s22, 5
      %p229 = scmp.ne.s32.totalorder %s224, %s226
      %p230 = scmp.eq.s32.totalorder %s22, 0
      %p231 = por %p229, %p230
      %p232 = scmp.ne.s32.totalorder %s224, %s226
      %p233 = scmp.eq.s32.totalorder %s27, 5
      %p234 = por %p232, %p233
      %p235 = scmp.ne.s32.totalorder %s226, %s227
      %p236 = scmp.eq.s32.totalorder %s27, 0
      %p237 = por %p235, %p236
      %p238 = scmp.ne.s32.totalorder %s226, %s227
      %p239 = scmp.eq.s32.totalorder %s28, 5
      %p240 = por %p238, %p239
      %p242 = scmp.ne.s32.totalorder %s227, %s241
      %p243 = scmp.eq.s32.totalorder %s28, 0
      %p244 = por %p242, %p243
      %s246 = sadd.s32 %s245, 1
      %p249 = scmp.eq.s32.totalorder %s22, 5
      %p250 = scmp.ne.s32.totalorder %s245, %s247
      %p251 = scmp.eq.s32.totalorder %s22, 0
      %p252 = por %p250, %p251
      %p253 = scmp.ne.s32.totalorder %s245, %s247
      %p254 = scmp.eq.s32.totalorder %s27, 5
      %p255 = por %p253, %p254
      %p256 = scmp.ne.s32.totalorder %s247, %s248
      %p257 = scmp.eq.s32.totalorder %s27, 0
      %p258 = por %p256, %p257
      %p259 = scmp.ne.s32.totalorder %s247, %s248
      %p260 = scmp.eq.s32.totalorder %s28, 5
      %p261 = por %p259, %p260
      %p263 = scmp.ne.s32.totalorder %s248, %s262
      %p264 = scmp.eq.s32.totalorder %s28, 0
      %p265 = por %p263, %p264
      %s266 = ssub.s32 %s29, %s41
      %p267 = scmp.eq.s32.totalorder %s266, 0
      %s269 = sadd.s32 %s268, 1
      %s270 = scalar_select %p267, %s268, %s269
      %p273 = pneg %p267
      %p274 = scmp.eq.s32.totalorder %s22, 5
      %p275 = por %p273, %p274
      %p276 = scmp.ne.s32.totalorder %s268, %s271
      %p277 = scmp.eq.s32.totalorder %s22, 0
      %p278 = por %p276, %p277
      %p279 = scmp.ne.s32.totalorder %s268, %s271
      %p280 = scmp.eq.s32.totalorder %s27, 5
      %p281 = por %p279, %p280
      %p282 = scmp.ne.s32.totalorder %s271, %s272
      %p283 = scmp.eq.s32.totalorder %s27, 0
      %p284 = por %p282, %p283
      %p285 = scmp.ne.s32.totalorder %s271, %s272
      %p286 = scmp.eq.s32.totalorder %s28, 5
      %p287 = por %p285, %p286
      %p289 = scmp.ne.s32.totalorder %s272, %s288
      %p290 = scmp.eq.s32.totalorder %s28, 0
      %p291 = por %p289, %p290
      %s292 = ssub.s32 %s29, %s41
      %p293 = scmp.eq.s32.totalorder %s292, 0
      %s295 = sadd.s32 %s294, 1
      %s296 = scalar_select %p293, %s294, %s295
      %p299 = pneg %p293
      %p300 = scmp.eq.s32.totalorder %s22, 5
      %p301 = por %p299, %p300
      %p302 = scmp.ne.s32.totalorder %s294, %s297
      %p303 = scmp.eq.s32.totalorder %s22, 0
      %p304 = por %p302, %p303
      %p305 = scmp.ne.s32.totalorder %s294, %s297
      %p306 = scmp.eq.s32.totalorder %s27, 5
      %p307 = por %p305, %p306
      %p308 = scmp.ne.s32.totalorder %s297, %s298
      %p309 = scmp.eq.s32.totalorder %s27, 0
      %p310 = por %p308, %p309
      %p311 = scmp.ne.s32.totalorder %s297, %s298
      %p312 = scmp.eq.s32.totalorder %s28, 5
      %p313 = por %p311, %p312
      %p315 = scmp.ne.s32.totalorder %s298, %s314
      %p316 = scmp.eq.s32.totalorder %s28, 0
      %p317 = por %p315, %p316
      %p318 = scmp.le.s32.totalorder 1, %s22
      %p319 = scmp.lt.s32.totalorder %s22, 7
      %p320 = pnand %p318, %p319
      %p321 = pneg %p320
      // Predicated region
      $region9: #{tpu_custom_call.1} parent=5 // pred_check
        _
      $region10: #{tpu_custom_call.1} parent=5 // pred_check_branch
        %323 = sbr.rel (%p320) target = $region12
      $region11: #{tpu_custom_call.1} parent=5 // pred_region
        %s324 = ssub.s32 %s22, 1
        // Predicated region
        $region13: #{tpu_custom_call.1} parent=11 // pred_check
          %p325 = pneg %p111
        $region14: #{tpu_custom_call.1} parent=11 // pred_check_branch
          %327 = sbr.rel (%p325) target = $region16
        $region15: #{tpu_custom_call.1} parent=11 // pred_region
          %s329 = ssub.s32 2048, 2048
          %330 = vsyncadd [#allocation9], %s329
          %s331 = sshll.u32 [#allocation8], 4
          %s332 = int_to_ptr.vmem [resolvable:$true] %s331
          %337 = dma.hbm_to_vmem [thread:$0]  %s2, 2048, %s332, [#allocation9], 128, 128, 8
        $region16: #{tpu_custom_call.1} parent=11 // pred_fallthru
          _
        // Predicated region
        $region17: #{tpu_custom_call.1} parent=11 // pred_check
          %p338 = pneg %p132
        $region18: #{tpu_custom_call.1} parent=11 // pred_check_branch
          %340 = sbr.rel (%p338) target = $region20
        $region19: #{tpu_custom_call.1} parent=11 // pred_region
          _
        $region20: #{tpu_custom_call.1} parent=11 // pred_fallthru
          _
        // Predicated region
        $region21: #{tpu_custom_call.1} parent=11 // pred_check
          %p341 = pneg %p153
        $region22: #{tpu_custom_call.1} parent=11 // pred_check_branch
          %343 = sbr.rel (%p341) target = $region24
        $region23: #{tpu_custom_call.1} parent=11 // pred_region
          _
        $region24: #{tpu_custom_call.1} parent=11 // pred_fallthru
          _
        // Predicated region
        $region25: #{tpu_custom_call.1} parent=11 // pred_check
          %p344 = pneg %p174
        $region26: #{tpu_custom_call.1} parent=11 // pred_check_branch
          %346 = sbr.rel (%p344) target = $region28
        $region27: #{tpu_custom_call.1} parent=11 // pred_region
          _
        $region28: #{tpu_custom_call.1} parent=11 // pred_fallthru
          _
        // Predicated region
        $region29: #{tpu_custom_call.1} parent=11 // pred_check
          %p347 = pneg %p195
        $region30: #{tpu_custom_call.1} parent=11 // pred_check_branch
          %349 = sbr.rel (%p347) target = $region32
        $region31: #{tpu_custom_call.1} parent=11 // pred_region
          _
        $region32: #{tpu_custom_call.1} parent=11 // pred_fallthru
          _
        // Predicated region
        $region33: #{tpu_custom_call.1} parent=11 // pred_check
          %p350 = pneg %p216
        $region34: #{tpu_custom_call.1} parent=11 // pred_check_branch
          %352 = sbr.rel (%p350) target = $region36
        $region35: #{tpu_custom_call.1} parent=11 // pred_region
          _
        $region36: #{tpu_custom_call.1} parent=11 // pred_fallthru
          _
        // Predicated region
        $region37: #{tpu_custom_call.1} parent=11 // pred_check
          %p353 = pneg %p237
        $region38: #{tpu_custom_call.1} parent=11 // pred_check_branch
          %355 = sbr.rel (%p353) target = $region40
        $region39: #{tpu_custom_call.1} parent=11 // pred_region
          _
        $region40: #{tpu_custom_call.1} parent=11 // pred_fallthru
          _
        // Predicated region
        $region41: #{tpu_custom_call.1} parent=11 // pred_check
          %p356 = pneg %p258
        $region42: #{tpu_custom_call.1} parent=11 // pred_check_branch
          %358 = sbr.rel (%p356) target = $region44
        $region43: #{tpu_custom_call.1} parent=11 // pred_region
          _
        $region44: #{tpu_custom_call.1} parent=11 // pred_fallthru
          _
      $region12: #{tpu_custom_call.1} parent=5 // pred_fallthru
        _
      %p359 = scmp.lt.s32.totalorder %s22, 6
      // Predicated region
      $region45: #{tpu_custom_call.1} parent=5 // pred_check
        %p360 = pneg %p359
      $region46: #{tpu_custom_call.1} parent=5 // pred_check_branch
        %362 = sbr.rel (%p360) target = $region48
      $region47: #{tpu_custom_call.1} parent=5 // pred_region
        // Predicated region
        $region49: #{tpu_custom_call.1} parent=47 // pred_check
          %p363 = pneg %p56
        $region50: #{tpu_custom_call.1} parent=47 // pred_check_branch
          %365 = sbr.rel (%p363) target = $region52
        $region51: #{tpu_custom_call.1} parent=47 // pred_region
          %s366 = sand.u32 %s46, 1
          %s367 = scalar_lea.sflag [#allocation7], %s366
          %s368 = sand.u32 %s46, 1
          %s369 = smul.addr %s368, 128
          %s370 = scalar_lea.vmem [#allocation6], %s369
          %s371 = smul.u32 16, %s30
          %s373 = ssub.s32 2048, 2048
          %374 = vsyncadd %s367, %s373
          %s375 = smul.addr %s29, 48
          %s376 = sadd.s32 %s371, %s375
          %s377 = smul.addr %s376, 128
          %s378 = scalar_lea.hbm %s0, %s377
          %s379 = sshll.u32 %s370, 4
          %s380 = int_to_ptr.vmem [resolvable:$true] %s379
          %385 = dma.hbm_to_vmem [thread:$0]  %s378, 2048, %s380, %s367, 128, 128, 8
        $region52: #{tpu_custom_call.1} parent=47 // pred_fallthru
          _
        // Predicated region
        $region53: #{tpu_custom_call.1} parent=47 // pred_check
          %p386 = pneg %p84
        $region54: #{tpu_custom_call.1} parent=47 // pred_check_branch
          %388 = sbr.rel (%p386) target = $region56
        $region55: #{tpu_custom_call.1} parent=47 // pred_region
          %p389 = scmp.lt.s32.totalorder %s29, 1
          %s390 = scalar_select %p389, %s29, 1
          %p391 = scmp.lt.s32.totalorder %s30, 2
          %s392 = scalar_select %p391, %s30, 2
          %s393 = smul.addr %s390, 3
          %s394 = sadd.s32 %s392, %s393
          %s395 = smul.addr %s394, 4
          %s396 = scalar_lea.vmem %s1, %s395
        $region56: #{tpu_custom_call.1} parent=47 // pred_fallthru
          _
      $region48: #{tpu_custom_call.1} parent=5 // pred_fallthru
        _
      %p397 = scmp.le.s32.totalorder 1, %s22
      %p398 = scmp.lt.s32.totalorder %s22, 7
      %p399 = pnand %p397, %p398
      %p400 = pneg %p399
      // Predicated region
      $region57: #{tpu_custom_call.1} parent=5 // pred_check
        _
      $region58: #{tpu_custom_call.1} parent=5 // pred_check_branch
        %402 = sbr.rel (%p399) target = $region60
      $region59: #{tpu_custom_call.1} parent=5 // pred_region
        %s403 = ssub.s32 %s22, 1
        %s404 = sand.u32 %s49, 1
        %s405 = scalar_lea.sflag [#allocation7], %s404
        %s406 = sand.u32 %s49, 1
        %s407 = smul.addr %s406, 128
        %s408 = scalar_lea.vmem [#allocation6], %s407
        // Predicated region
        $region61: #{tpu_custom_call.1} parent=59 // pred_check
          %p409 = pneg %p62
        $region62: #{tpu_custom_call.1} parent=59 // pred_check_branch
          %411 = sbr.rel (%p409) target = $region64
        $region63: #{tpu_custom_call.1} parent=59 // pred_region
          %412 = dma.done %s405, 2048
        $region64: #{tpu_custom_call.1} parent=59 // pred_fallthru
          _
        // Predicated region
        $region65: #{tpu_custom_call.1} parent=59 // pred_check
          %p413 = pneg %p111
        $region66: #{tpu_custom_call.1} parent=59 // pred_check_branch
          %415 = sbr.rel (%p413) target = $region68
        $region67: #{tpu_custom_call.1} parent=59 // pred_region
          %416 = dma.done [#allocation9], 2048
        $region68: #{tpu_custom_call.1} parent=59 // pred_fallthru
          _
        %s417 = sand.u32 %s49, 1
        %s418 = scalar_lea.sflag [#allocation7], %s417
        %s419 = sand.u32 %s49, 1
        %s420 = smul.addr %s419, 128
        %s421 = scalar_lea.vmem [#allocation6], %s420
        %p422 = pneg %p62
        %p423 = pneg %p59
        %p424 = scmp.lt.s32.totalorder %s31, 1
        %s425 = scalar_select %p424, %s31, 1
        %p426 = scmp.lt.s32.totalorder %s32, 2
        %s427 = scalar_select %p426, %s32, 2
        %s428 = smul.addr %s425, 3
        %s429 = sadd.s32 %s427, %s428
        %s430 = smul.addr %s429, 4
        %s431 = scalar_lea.vmem %s1, %s430
        %p432 = pneg %p90
        %p433 = pneg %p87
        %p434 = pneg %p111
        %p435 = pneg %p108
        %p436 = pneg %p132
        %p437 = pneg %p129
        %p438 = pneg %p153
        %p439 = pneg %p150
        %p440 = pneg %p174
        %p441 = pneg %p171
        %p442 = pneg %p195
        %p443 = pneg %p192
        %p444 = pneg %p216
        %p445 = pneg %p213
        %p446 = pneg %p237
        %p447 = pneg %p234
        %p448 = pneg %p258
        %p449 = pneg %p255
        %p450 = pneg %p284
        %p451 = pneg %p281
        %p452 = scmp.lt.s32.totalorder %s31, 1
        %s453 = scalar_select %p452, %s31, 1
        %s454 = smul.addr %s453, 4
        %s455 = scalar_lea.vmem %s10, %s454
        %p456 = pneg %p310
        %p457 = pneg %p307
        %p458 = scmp.lt.s32.totalorder %s31, 1
        %s459 = scalar_select %p458, %s31, 1
        %s460 = smul.addr %s459, 3
        %s461 = smul.addr %s460, 4
        %s462 = scalar_lea.vmem %s11, %s461
        %s463 = smul.u32 16, %s32
        %p464 = scmp.lt.s32.totalorder %s31, 1
        %s465 = scalar_select %p464, %s31, 1
        %p466 = scmp.lt.s32.totalorder %s32, 2
        %s467 = scalar_select %p466, %s32, 2
        %s468 = smul.addr %s465, 3
        %s469 = sadd.s32 %s467, %s468
        %s470 = smul.addr %s469, 4
        %s471 = scalar_lea.vmem %s1, %s470
        %p472 = scmp.lt.s32.totalorder %s31, 1
        %s473 = scalar_select %p472, %s31, 1
        %s474 = smul.addr %s473, 4
        %s475 = scalar_lea.vmem %s10, %s474
        %p476 = scmp.lt.s32.totalorder %s31, 1
        %s477 = scalar_select %p476, %s31, 1
        %s478 = smul.addr %s477, 3
        %s479 = smul.addr %s478, 4
        %s480 = scalar_lea.vmem %s11, %s479
        %p481 = scmp.eq.s32.totalorder %s32, 0
        // Predicated region
        $region69: #{tpu_custom_call.1} parent=59 // pred_check
          %p482 = pneg %p481
        $region70: #{tpu_custom_call.1} parent=59 // pred_check_branch
          %484 = sbr.rel (%p482) target = $region72
        $region71: #{tpu_custom_call.1} parent=59 // pred_region
          %vm485 = vcmask 2048
          %486 = vst.msk [vmem:[#allocation2] sm:$0x7] %vm485, -inf
          %487 = vst.msk [vmem:[#allocation3] sm:$0x7] %vm485, 0.0
          %488 = vst [vmem:[#allocation4] sm:$0x7] 0.0
        $region72: #{tpu_custom_call.1} parent=59 // pred_fallthru
          _
        %v489 = vld [vmem:[%s408] sm:$0xff]
        %v490 = vld [vmem:[%s408 + $0x8] sm:$0xff]
        %v491 = vld [vmem:[%s408 + $0x10] sm:$0xff]
        %v492 = vld [vmem:[%s408 + $0x18] sm:$0xff]
        %v493 = vld [vmem:[%s408 + $0x20] sm:$0xff]
        %v494 = vld [vmem:[%s408 + $0x28] sm:$0xff]
        %v495 = vld [vmem:[%s408 + $0x30] sm:$0xff]
        %v496 = vld [vmem:[%s408 + $0x38] sm:$0xff]
        %v497 = vld [vmem:[%s408 + $0x40] sm:$0xff]
        %v498 = vld [vmem:[%s408 + $0x48] sm:$0xff]
        %v499 = vld [vmem:[%s408 + $0x50] sm:$0xff]
        %v500 = vld [vmem:[%s408 + $0x58] sm:$0xff]
        %v501 = vld [vmem:[%s408 + $0x60] sm:$0xff]
        %v502 = vld [vmem:[%s408 + $0x68] sm:$0xff]
        %v503 = vld [vmem:[%s408 + $0x70] sm:$0xff]
        %v504 = vld [vmem:[%s408 + $0x78] sm:$0xff]
        %v505 = vld [vmem:[#allocation8] sm:$0xff]
        %v506 = vld [vmem:[#allocation8 + $0x8] sm:$0xff]
        %v507 = vld [vmem:[#allocation8 + $0x10] sm:$0xff]
        %v508 = vld [vmem:[#allocation8 + $0x18] sm:$0xff]
        %v509 = vld [vmem:[#allocation8 + $0x20] sm:$0xff]
        %v510 = vld [vmem:[#allocation8 + $0x28] sm:$0xff]
        %v511 = vld [vmem:[#allocation8 + $0x30] sm:$0xff]
        %v512 = vld [vmem:[#allocation8 + $0x38] sm:$0xff]
        %v513 = vld [vmem:[#allocation8 + $0x40] sm:$0xff]
        %v514 = vld [vmem:[#allocation8 + $0x48] sm:$0xff]
        %v515 = vld [vmem:[#allocation8 + $0x50] sm:$0xff]
        %v516 = vld [vmem:[#allocation8 + $0x58] sm:$0xff]
        %v517 = vld [vmem:[#allocation8 + $0x60] sm:$0xff]
        %v518 = vld [vmem:[#allocation8 + $0x68] sm:$0xff]
        %v519 = vld [vmem:[#allocation8 + $0x70] sm:$0xff]
        %v520 = vld [vmem:[#allocation8 + $0x78] sm:$0xff]
        %v521 = vld [vmem:[%s3] sm:$0x1]
        %v523 = vlaneseq
        %v524 = vshrl.u32 %v523, 7
        %v525 = vsub.s32 0, %v524
        %v526 = vrot.slane %v521, %v525
        %528 = vmatprep.subr.mxu0 0.0
        %529 = vmatpush1.msra.mxu0 %v505
        %530 = vmatprep.subr.mxu0 0.0
        %531 = vmatpush1.msra.mxu0 %v506
        %532 = vmatprep.subr.mxu0 0.0
        %533 = vmatpush1.msra.mxu0 %v507
        %534 = vmatprep.subr.mxu0 0.0
        %535 = vmatpush1.msra.mxu0 %v508
        %536 = vmatprep.subr.mxu0 0.0
        %537 = vmatpush1.msra.mxu0 %v509
        %538 = vmatprep.subr.mxu0 0.0
        %539 = vmatpush1.msra.mxu0 %v510
        %540 = vmatprep.subr.mxu0 0.0
        %541 = vmatpush1.msra.mxu0 %v511
        %542 = vmatprep.subr.mxu0 0.0
        %543 = vmatpush1.msra.mxu0 %v512
        %544 = vmatprep.subr.mxu0 0.0
        %545 = vmatpush1.msra.mxu0 %v513
        %546 = vmatprep.subr.mxu0 0.0
        %547 = vmatpush1.msra.mxu0 %v514
        %548 = vmatprep.subr.mxu0 0.0
        %549 = vmatpush1.msra.mxu0 %v515
        %550 = vmatprep.subr.mxu0 0.0
        %551 = vmatpush1.msra.mxu0 %v516
        %552 = vmatprep.subr.mxu0 0.0
        %553 = vmatpush1.msra.mxu0 %v517
        %554 = vmatprep.subr.mxu0 0.0
        %555 = vmatpush1.msra.mxu0 %v518
        %556 = vmatprep.subr.mxu0 0.0
        %557 = vmatpush1.msra.mxu0 %v519
        %558 = vmatprep.subr.mxu0 0.0
        %559 = vmatpush1.msra.mxu0 %v520
        %560 = vmatprep.subr.mxu0 0.0
        %561 = vmatpush1.msra.mxu0 0.0
        %562 = vmatprep.subr.mxu0 0.0
        %563 = vmatpush1.msra.mxu0 0.0
        %564 = vmatprep.subr.mxu0 0.0
        %565 = vmatpush1.msra.mxu0 0.0
        %566 = vmatprep.subr.mxu0 0.0
        %567 = vmatpush1.msra.mxu0 0.0
        %568 = vmatprep.subr.mxu0 0.0
        %569 = vmatpush1.msra.mxu0 0.0
        %570 = vmatprep.subr.mxu0 0.0
        %571 = vmatpush1.msra.mxu0 0.0
        %572 = vmatprep.subr.mxu0 0.0
        %573 = vmatpush1.msra.mxu0 0.0
        %574 = vmatprep.subr.mxu0 0.0
        %575 = vmatpush1.msra.mxu0 0.0
        %576 = vmatprep.subr.mxu0 0.0
        %577 = vmatpush1.msra.mxu0 0.0
        %578 = vmatprep.subr.mxu0 0.0
        %579 = vmatpush1.msra.mxu0 0.0
        %580 = vmatprep.subr.mxu0 0.0
        %581 = vmatpush1.msra.mxu0 0.0
        %582 = vmatprep.subr.mxu0 0.0
        %583 = vmatpush1.msra.mxu0 0.0
        %584 = vmatprep.subr.mxu0 0.0
        %585 = vmatpush1.msra.mxu0 0.0
        %586 = vmatprep.subr.mxu0 0.0
        %587 = vmatpush1.msra.mxu0 0.0
        %588 = vmatprep.subr.mxu0 0.0
        %589 = vmatpush1.msra.mxu0 0.0
        %590 = vmatprep.subr.mxu0 0.0
        %591 = vmatpush1.msra.mxu0 0.0
        %592 = vmatprep.mubr.f32.mxu0 0.0
        %593 = vmatmul.mubr.f32.gmra.mrb[0].mxu0 %v489
        %v594 = vpop.f32.mrb[0].mxu0
        %v595 = vadd.f32 %v526, %v594
        %v596 = vpop.f32.mrb[0].mxu0
        %597 = vmatprep.mubr.f32.mxu0 0.0
        %598 = vmatmul.mubr.f32.gmra.mrb[0].mxu0 %v490
        %v599 = vpop.f32.mrb[0].mxu0
        %v600 = vadd.f32 %v526, %v599
        %v601 = vpop.f32.mrb[0].mxu0
        %602 = vmatprep.mubr.f32.mxu0 0.0
        %603 = vmatmul.mubr.f32.gmra.mrb[0].mxu0 %v491
        %v604 = vpop.f32.mrb[0].mxu0
        %v605 = vadd.f32 %v526, %v604
        %v606 = vpop.f32.mrb[0].mxu0
        %607 = vmatprep.mubr.f32.mxu0 0.0
        %608 = vmatmul.mubr.f32.gmra.mrb[0].mxu0 %v492
        %v609 = vpop.f32.mrb[0].mxu0
        %v610 = vadd.f32 %v526, %v609
        %v611 = vpop.f32.mrb[0].mxu0
        %612 = vmatprep.mubr.f32.mxu0 0.0
        %613 = vmatmul.mubr.f32.gmra.mrb[0].mxu0 %v493
        %v614 = vpop.f32.mrb[0].mxu0
        %v615 = vadd.f32 %v526, %v614
        %v616 = vpop.f32.mrb[0].mxu0
        %617 = vmatprep.mubr.f32.mxu0 0.0
        %618 = vmatmul.mubr.f32.gmra.mrb[0].mxu0 %v494
        %v619 = vpop.f32.mrb[0].mxu0
        %v620 = vadd.f32 %v526, %v619
        %v621 = vpop.f32.mrb[0].mxu0
        %622 = vmatprep.mubr.f32.mxu0 0.0
        %623 = vmatmul.mubr.f32.gmra.mrb[0].mxu0 %v495
        %v624 = vpop.f32.mrb[0].mxu0
        %v625 = vadd.f32 %v526, %v624
        %v626 = vpop.f32.mrb[0].mxu0
        %627 = vmatprep.mubr.f32.mxu0 0.0
        %628 = vmatmul.mubr.f32.gmra.mrb[0].mxu0 %v496
        %v629 = vpop.f32.mrb[0].mxu0
        %v630 = vadd.f32 %v526, %v629
        %v631 = vpop.f32.mrb[0].mxu0
        %632 = vmatprep.mubr.f32.mxu0 0.0
        %633 = vmatmul.mubr.f32.gmra.mrb[0].mxu0 %v497
        %v634 = vpop.f32.mrb[0].mxu0
        %v635 = vadd.f32 %v526, %v634
        %v636 = vpop.f32.mrb[0].mxu0
        %637 = vmatprep.mubr.f32.mxu0 0.0
        %638 = vmatmul.mubr.f32.gmra.mrb[0].mxu0 %v498
        %v639 = vpop.f32.mrb[0].mxu0
        %v640 = vadd.f32 %v526, %v639
        %v641 = vpop.f32.mrb[0].mxu0
        %642 = vmatprep.mubr.f32.mxu0 0.0
        %643 = vmatmul.mubr.f32.gmra.mrb[0].mxu0 %v499
        %v644 = vpop.f32.mrb[0].mxu0
        %v645 = vadd.f32 %v526, %v644
        %v646 = vpop.f32.mrb[0].mxu0
        %647 = vmatprep.mubr.f32.mxu0 0.0
        %648 = vmatmul.mubr.f32.gmra.mrb[0].mxu0 %v500
        %v649 = vpop.f32.mrb[0].mxu0
        %v650 = vadd.f32 %v526, %v649
        %v651 = vpop.f32.mrb[0].mxu0
        %652 = vmatprep.mubr.f32.mxu0 0.0
        %653 = vmatmul.mubr.f32.gmra.mrb[0].mxu0 %v501
        %v654 = vpop.f32.mrb[0].mxu0
        %v655 = vadd.f32 %v526, %v654
        %v656 = vpop.f32.mrb[0].mxu0
        %657 = vmatprep.mubr.f32.mxu0 0.0
        %658 = vmatmul.mubr.f32.gmra.mrb[0].mxu0 %v502
        %v659 = vpop.f32.mrb[0].mxu0
        %v660 = vadd.f32 %v526, %v659
        %v661 = vpop.f32.mrb[0].mxu0
        %662 = vmatprep.mubr.f32.mxu0 0.0
        %663 = vmatmul.mubr.f32.gmra.mrb[0].mxu0 %v503
        %v664 = vpop.f32.mrb[0].mxu0
        %v665 = vadd.f32 %v526, %v664
        %v666 = vpop.f32.mrb[0].mxu0
        %667 = vmatprep.mubr.f32.mxu0 0.0
        %668 = vmatmul.mubr.f32.gmra.mrb[0].mxu0 %v504
        %v669 = vpop.f32.mrb[0].mxu0
        %v670 = vadd.f32 %v526, %v669
        %v671 = vpop.f32.mrb[0].mxu0
        %672 = vdwg.mxu0
        %v673 = vmax.f32 %v595, 0.0
        %v674 = vmax.f32 %v600, 0.0
        %v675 = vmax.f32 %v605, 0.0
        %v676 = vmax.f32 %v610, 0.0
        %v677 = vmax.f32 %v615, 0.0
        %v678 = vmax.f32 %v620, 0.0
        %v679 = vmax.f32 %v625, 0.0
        %v680 = vmax.f32 %v630, 0.0
        %v681 = vmax.f32 %v635, 0.0
        %v682 = vmax.f32 %v640, 0.0
        %v683 = vmax.f32 %v645, 0.0
        %v684 = vmax.f32 %v650, 0.0
        %v685 = vmax.f32 %v655, 0.0
        %v686 = vmax.f32 %v660, 0.0
        %v687 = vmax.f32 %v665, 0.0
        %v688 = vmax.f32 %v670, 0.0
        %v689 = vld [vmem:[%s4] sm:$0xff]
        %v690 = vld [vmem:[%s4 + $0x8] sm:$0xff]
        %v691 = vld [vmem:[%s4 + $0x10] sm:$0xff]
        %v692 = vld [vmem:[%s4 + $0x18] sm:$0xff]
        %v693 = vld [vmem:[%s4 + $0x20] sm:$0xff]
        %v694 = vld [vmem:[%s4 + $0x28] sm:$0xff]
        %v695 = vld [vmem:[%s4 + $0x30] sm:$0xff]
        %v696 = vld [vmem:[%s4 + $0x38] sm:$0xff]
        %v697 = vld [vmem:[%s4 + $0x40] sm:$0xff]
        %v698 = vld [vmem:[%s4 + $0x48] sm:$0xff]
        %v699 = vld [vmem:[%s4 + $0x50] sm:$0xff]
        %v700 = vld [vmem:[%s4 + $0x58] sm:$0xff]
        %v701 = vld [vmem:[%s4 + $0x60] sm:$0xff]
        %v702 = vld [vmem:[%s4 + $0x68] sm:$0xff]
        %v703 = vld [vmem:[%s4 + $0x70] sm:$0xff]
        %v704 = vld [vmem:[%s4 + $0x78] sm:$0xff]
        %v705 = vld [vmem:[%s4 + $0x80] sm:$0xff]
        %v706 = vld [vmem:[%s4 + $0x88] sm:$0xff]
        %v707 = vld [vmem:[%s4 + $0x90] sm:$0xff]
        %v708 = vld [vmem:[%s4 + $0x98] sm:$0xff]
        %v709 = vld [vmem:[%s4 + $0xa0] sm:$0xff]
        %v710 = vld [vmem:[%s4 + $0xa8] sm:$0xff]
        %v711 = vld [vmem:[%s4 + $0xb0] sm:$0xff]
        %v712 = vld [vmem:[%s4 + $0xb8] sm:$0xff]
        %v713 = vld [vmem:[%s4 + $0xc0] sm:$0xff]
        %v714 = vld [vmem:[%s4 + $0xc8] sm:$0xff]
        %v715 = vld [vmem:[%s4 + $0xd0] sm:$0xff]
        %v716 = vld [vmem:[%s4 + $0xd8] sm:$0xff]
        %v717 = vld [vmem:[%s4 + $0xe0] sm:$0xff]
        %v718 = vld [vmem:[%s4 + $0xe8] sm:$0xff]
        %v719 = vld [vmem:[%s4 + $0xf0] sm:$0xff]
        %v720 = vld [vmem:[%s4 + $0xf8] sm:$0xff]
        %v721 = vld [vmem:[%s5] sm:$0x3]
        %v723 = vlaneseq
        %v724 = vshrl.u32 %v723, 7
        %v725 = vsub.s32 0, %v724
        %v726 = vrot.slane %v721, %v725
        %v727 = vlaneseq
        %v728 = vshrl.u32 %v727, 7
        %v729 = vsub.s32 1, %v728
        %v730 = vrot.slane %v721, %v729
        %733 = vmatprep.subr.mxu0 %v690
        %734 = vmatpush1.msra.mxu0 %v689
        %735 = vmatprep.subr.mxu0 %v692
        %736 = vmatpush1.msra.mxu0 %v691
        %737 = vmatprep.subr.mxu0 %v694
        %738 = vmatpush1.msra.mxu0 %v693
        %739 = vmatprep.subr.mxu0 %v696
        %740 = vmatpush1.msra.mxu0 %v695
        %741 = vmatprep.subr.mxu0 %v698
        %742 = vmatpush1.msra.mxu0 %v697
        %743 = vmatprep.subr.mxu0 %v700
        %744 = vmatpush1.msra.mxu0 %v699
        %745 = vmatprep.subr.mxu0 %v702
        %746 = vmatpush1.msra.mxu0 %v701
        %747 = vmatprep.subr.mxu0 %v704
        %748 = vmatpush1.msra.mxu0 %v703
        %749 = vmatprep.subr.mxu0 %v706
        %750 = vmatpush1.msra.mxu0 %v705
        %751 = vmatprep.subr.mxu0 %v708
        %752 = vmatpush1.msra.mxu0 %v707
        %753 = vmatprep.subr.mxu0 %v710
        %754 = vmatpush1.msra.mxu0 %v709
        %755 = vmatprep.subr.mxu0 %v712
        %756 = vmatpush1.msra.mxu0 %v711
        %757 = vmatprep.subr.mxu0 %v714
        %758 = vmatpush1.msra.mxu0 %v713
        %759 = vmatprep.subr.mxu0 %v716
        %760 = vmatpush1.msra.mxu0 %v715
        %761 = vmatprep.subr.mxu0 %v718
        %762 = vmatpush1.msra.mxu0 %v717
        %763 = vmatprep.subr.mxu0 %v720
        %764 = vmatpush1.msra.mxu0 %v719
        %765 = vmatprep.subr.mxu0 0.0
        %766 = vmatpush1.msra.mxu0 0.0
        %767 = vmatprep.subr.mxu0 0.0
        %768 = vmatpush1.msra.mxu0 0.0
        %769 = vmatprep.subr.mxu0 0.0
        %770 = vmatpush1.msra.mxu0 0.0
        %771 = vmatprep.subr.mxu0 0.0
        %772 = vmatpush1.msra.mxu0 0.0
        %773 = vmatprep.subr.mxu0 0.0
        %774 = vmatpush1.msra.mxu0 0.0
        %775 = vmatprep.subr.mxu0 0.0
        %776 = vmatpush1.msra.mxu0 0.0
        %777 = vmatprep.subr.mxu0 0.0
        %778 = vmatpush1.msra.mxu0 0.0
        %779 = vmatprep.subr.mxu0 0.0
        %780 = vmatpush1.msra.mxu0 0.0
        %781 = vmatprep.subr.mxu0 0.0
        %782 = vmatpush1.msra.mxu0 0.0
        %783 = vmatprep.subr.mxu0 0.0
        %784 = vmatpush1.msra.mxu0 0.0
        %785 = vmatprep.subr.mxu0 0.0
        %786 = vmatpush1.msra.mxu0 0.0
        %787 = vmatprep.subr.mxu0 0.0
        %788 = vmatpush1.msra.mxu0 0.0
        %789 = vmatprep.subr.mxu0 0.0
        %790 = vmatpush1.msra.mxu0 0.0
        %791 = vmatprep.subr.mxu0 0.0
        %792 = vmatpush1.msra.mxu0 0.0
        %793 = vmatprep.subr.mxu0 0.0
        %794 = vmatpush1.msra.mxu0 0.0
        %795 = vmatprep.subr.mxu0 0.0
        %796 = vmatpush1.msra.mxu0 0.0
        %797 = vmatprep.mubr.f32.mxu0 0.0
        %798 = vmatmul.mubr.f32.gmra.mrb[0].mxu0 %v673
        %v799 = vpop.f32.mrb[0].mxu0
        %v800 = vadd.f32 %v726, %v799
        %v801 = vpop.f32.mrb[0].mxu0
        %v802 = vadd.f32 %v730, %v801
        %803 = vmatprep.mubr.f32.mxu0 0.0
        %804 = vmatmul.mubr.f32.gmra.mrb[0].mxu0 %v674
        %v805 = vpop.f32.mrb[0].mxu0
        %v806 = vadd.f32 %v726, %v805
        %v807 = vpop.f32.mrb[0].mxu0
        %v808 = vadd.f32 %v730, %v807
        %809 = vmatprep.mubr.f32.mxu0 0.0
        %810 = vmatmul.mubr.f32.gmra.mrb[0].mxu0 %v675
        %v811 = vpop.f32.mrb[0].mxu0
        %v812 = vadd.f32 %v726, %v811
        %v813 = vpop.f32.mrb[0].mxu0
        %v814 = vadd.f32 %v730, %v813
        %815 = vmatprep.mubr.f32.mxu0 0.0
        %816 = vmatmul.mubr.f32.gmra.mrb[0].mxu0 %v676
        %v817 = vpop.f32.mrb[0].mxu0
        %v818 = vadd.f32 %v726, %v817
        %v819 = vpop.f32.mrb[0].mxu0
        %v820 = vadd.f32 %v730, %v819
        %821 = vmatprep.mubr.f32.mxu0 0.0
        %822 = vmatmul.mubr.f32.gmra.mrb[0].mxu0 %v677
        %v823 = vpop.f32.mrb[0].mxu0
        %v824 = vadd.f32 %v726, %v823
        %v825 = vpop.f32.mrb[0].mxu0
        %v826 = vadd.f32 %v730, %v825
        %827 = vmatprep.mubr.f32.mxu0 0.0
        %828 = vmatmul.mubr.f32.gmra.mrb[0].mxu0 %v678
        %v829 = vpop.f32.mrb[0].mxu0
        %v830 = vadd.f32 %v726, %v829
        %v831 = vpop.f32.mrb[0].mxu0
        %v832 = vadd.f32 %v730, %v831
        %833 = vmatprep.mubr.f32.mxu0 0.0
        %834 = vmatmul.mubr.f32.gmra.mrb[0].mxu0 %v679
        %v835 = vpop.f32.mrb[0].mxu0
        %v836 = vadd.f32 %v726, %v835
        %v837 = vpop.f32.mrb[0].mxu0
        %v838 = vadd.f32 %v730, %v837
        %839 = vmatprep.mubr.f32.mxu0 0.0
        %840 = vmatmul.mubr.f32.gmra.mrb[0].mxu0 %v680
        %v841 = vpop.f32.mrb[0].mxu0
        %v842 = vadd.f32 %v726, %v841
        %v843 = vpop.f32.mrb[0].mxu0
        %v844 = vadd.f32 %v730, %v843
        %845 = vmatprep.mubr.f32.mxu0 0.0
        %846 = vmatmul.mubr.f32.gmra.mrb[0].mxu0 %v681
        %v847 = vpop.f32.mrb[0].mxu0
        %v848 = vadd.f32 %v726, %v847
        %v849 = vpop.f32.mrb[0].mxu0
        %v850 = vadd.f32 %v730, %v849
        %851 = vmatprep.mubr.f32.mxu0 0.0
        %852 = vmatmul.mubr.f32.gmra.mrb[0].mxu0 %v682
        %v853 = vpop.f32.mrb[0].mxu0
        %v854 = vadd.f32 %v726, %v853
        %v855 = vpop.f32.mrb[0].mxu0
        %v856 = vadd.f32 %v730, %v855
        %857 = vmatprep.mubr.f32.mxu0 0.0
        %858 = vmatmul.mubr.f32.gmra.mrb[0].mxu0 %v683
        %v859 = vpop.f32.mrb[0].mxu0
        %v860 = vadd.f32 %v726, %v859
        %v861 = vpop.f32.mrb[0].mxu0
        %v862 = vadd.f32 %v730, %v861
        %863 = vmatprep.mubr.f32.mxu0 0.0
        %864 = vmatmul.mubr.f32.gmra.mrb[0].mxu0 %v684
        %v865 = vpop.f32.mrb[0].mxu0
        %v866 = vadd.f32 %v726, %v865
        %v867 = vpop.f32.mrb[0].mxu0
        %v868 = vadd.f32 %v730, %v867
        %869 = vmatprep.mubr.f32.mxu0 0.0
        %870 = vmatmul.mubr.f32.gmra.mrb[0].mxu0 %v685
        %v871 = vpop.f32.mrb[0].mxu0
        %v872 = vadd.f32 %v726, %v871
        %v873 = vpop.f32.mrb[0].mxu0
        %v874 = vadd.f32 %v730, %v873
        %875 = vmatprep.mubr.f32.mxu0 0.0
        %876 = vmatmul.mubr.f32.gmra.mrb[0].mxu0 %v686
        %v877 = vpop.f32.mrb[0].mxu0
        %v878 = vadd.f32 %v726, %v877
        %v879 = vpop.f32.mrb[0].mxu0
        %v880 = vadd.f32 %v730, %v879
        %881 = vmatprep.mubr.f32.mxu0 0.0
        %882 = vmatmul.mubr.f32.gmra.mrb[0].mxu0 %v687
        %v883 = vpop.f32.mrb[0].mxu0
        %v884 = vadd.f32 %v726, %v883
        %v885 = vpop.f32.mrb[0].mxu0
        %v886 = vadd.f32 %v730, %v885
        %887 = vmatprep.mubr.f32.mxu0 0.0
        %888 = vmatmul.mubr.f32.gmra.mrb[0].mxu0 %v688
        %v889 = vpop.f32.mrb[0].mxu0
        %v890 = vadd.f32 %v726, %v889
        %v891 = vpop.f32.mrb[0].mxu0
        %v892 = vadd.f32 %v730, %v891
        %893 = vdwg.mxu0
        %v894 = vtanh.pop %v800
        %v895 = vtanh.pop %v806
        %v896 = vtanh.pop %v812
        %v897 = vtanh.pop %v818
        %v898 = vtanh.pop %v824
        %v899 = vtanh.pop %v830
        %v900 = vtanh.pop %v836
        %v901 = vtanh.pop %v842
        %v902 = vtanh.pop %v848
        %v903 = vtanh.pop %v854
        %v904 = vtanh.pop %v860
        %v905 = vtanh.pop %v866
        %v906 = vtanh.pop %v872
        %v907 = vtanh.pop %v878
        %v908 = vtanh.pop %v884
        %v909 = vtanh.pop %v890
        %v910 = vmul.f32 %v802, 0.5
        %v911 = vmul.f32 %v808, 0.5
        %v912 = vmul.f32 %v814, 0.5
        %v913 = vmul.f32 %v820, 0.5
        %v914 = vmul.f32 %v826, 0.5
        %v915 = vmul.f32 %v832, 0.5
        %v916 = vmul.f32 %v838, 0.5
        %v917 = vmul.f32 %v844, 0.5
        %v918 = vmul.f32 %v850, 0.5
        %v919 = vmul.f32 %v856, 0.5
        %v920 = vmul.f32 %v862, 0.5
        %v921 = vmul.f32 %v868, 0.5
        %v922 = vmul.f32 %v874, 0.5
        %v923 = vmul.f32 %v880, 0.5
        %v924 = vmul.f32 %v886, 0.5
        %v925 = vmul.f32 %v892, 0.5
        %v926 = vtanh.pop %v910
        %v927 = vtanh.pop %v911
        %v928 = vtanh.pop %v912
        %v929 = vtanh.pop %v913
        %v930 = vtanh.pop %v914
        %v931 = vtanh.pop %v915
        %v932 = vtanh.pop %v916
        %v933 = vtanh.pop %v917
        %v934 = vtanh.pop %v918
        %v935 = vtanh.pop %v919
        %v936 = vtanh.pop %v920
        %v937 = vtanh.pop %v921
        %v938 = vtanh.pop %v922
        %v939 = vtanh.pop %v923
        %v940 = vtanh.pop %v924
        %v941 = vtanh.pop %v925
        %v942 = vmul.f32 %v926, 0.5
        %v943 = vmul.f32 %v927, 0.5
        %v944 = vmul.f32 %v928, 0.5
        %v945 = vmul.f32 %v929, 0.5
        %v946 = vmul.f32 %v930, 0.5
        %v947 = vmul.f32 %v931, 0.5
        %v948 = vmul.f32 %v932, 0.5
        %v949 = vmul.f32 %v933, 0.5
        %v950 = vmul.f32 %v934, 0.5
        %v951 = vmul.f32 %v935, 0.5
        %v952 = vmul.f32 %v936, 0.5
        %v953 = vmul.f32 %v937, 0.5
        %v954 = vmul.f32 %v938, 0.5
        %v955 = vmul.f32 %v939, 0.5
        %v956 = vmul.f32 %v940, 0.5
        %v957 = vmul.f32 %v941, 0.5
        %v958 = vadd.f32 %v942, 0.5
        %v959 = vadd.f32 %v943, 0.5
        %v960 = vadd.f32 %v944, 0.5
        %v961 = vadd.f32 %v945, 0.5
        %v962 = vadd.f32 %v946, 0.5
        %v963 = vadd.f32 %v947, 0.5
        %v964 = vadd.f32 %v948, 0.5
        %v965 = vadd.f32 %v949, 0.5
        %v966 = vadd.f32 %v950, 0.5
        %v967 = vadd.f32 %v951, 0.5
        %v968 = vadd.f32 %v952, 0.5
        %v969 = vadd.f32 %v953, 0.5
        %v970 = vadd.f32 %v954, 0.5
        %v971 = vadd.f32 %v955, 0.5
        %v972 = vadd.f32 %v956, 0.5
        %v973 = vadd.f32 %v957, 0.5
        %v974 = vmul.f32 %v894, %v958
        %v975 = vmul.f32 %v895, %v959
        %v976 = vmul.f32 %v896, %v960
        %v977 = vmul.f32 %v897, %v961
        %v978 = vmul.f32 %v898, %v962
        %v979 = vmul.f32 %v899, %v963
        %v980 = vmul.f32 %v900, %v964
        %v981 = vmul.f32 %v901, %v965
        %v982 = vmul.f32 %v902, %v966
        %v983 = vmul.f32 %v903, %v967
        %v984 = vmul.f32 %v904, %v968
        %v985 = vmul.f32 %v905, %v969
        %v986 = vmul.f32 %v906, %v970
        %v987 = vmul.f32 %v907, %v971
        %v988 = vmul.f32 %v908, %v972
        %v989 = vmul.f32 %v909, %v973
        %v990 = vld [vmem:[%s6] sm:$0xff]
        %v991 = vld [vmem:[%s6 + $0x8] sm:$0xff]
        %v992 = vld [vmem:[%s6 + $0x10] sm:$0xff]
        %v993 = vld [vmem:[%s6 + $0x18] sm:$0xff]
        %v994 = vld [vmem:[%s6 + $0x20] sm:$0xff]
        %v995 = vld [vmem:[%s6 + $0x28] sm:$0xff]
        %v996 = vld [vmem:[%s6 + $0x30] sm:$0xff]
        %v997 = vld [vmem:[%s6 + $0x38] sm:$0xff]
        %v998 = vld [vmem:[%s6 + $0x40] sm:$0xff]
        %v999 = vld [vmem:[%s6 + $0x48] sm:$0xff]
        %v1000 = vld [vmem:[%s6 + $0x50] sm:$0xff]
        %v1001 = vld [vmem:[%s6 + $0x58] sm:$0xff]
        %v1002 = vld [vmem:[%s6 + $0x60] sm:$0xff]
        %v1003 = vld [vmem:[%s6 + $0x68] sm:$0xff]
        %v1004 = vld [vmem:[%s6 + $0x70] sm:$0xff]
        %v1005 = vld [vmem:[%s6 + $0x78] sm:$0xff]
        %v1006 = vld [vmem:[%s7] sm:$0x7]
        %1008 = vset.pattern.permute.xlu0 0
        %1009 = vperm.xlu0 %1008, %v1006
        %v1010 = vpop.permute.xlu0 %1009
        %1012 = vxpose.xlu0.b32.start [1/16] %v990, 128
        %1013 = vxpose.xlu0.b32.cont [2/16] %v991, 128
        %1014 = vxpose.xlu0.b32.cont [3/16] %v992, 128
        %1015 = vxpose.xlu0.b32.cont [4/16] %v993, 128
        %1016 = vxpose.xlu0.b32.cont [5/16] %v994, 128
        %1017 = vxpose.xlu0.b32.cont [6/16] %v995, 128
        %1018 = vxpose.xlu0.b32.cont [7/16] %v996, 128
        %1019 = vxpose.xlu0.b32.cont [8/16] %v997, 128
        %1020 = vxpose.xlu0.b32.cont [9/16] %v998, 128
        %1021 = vxpose.xlu0.b32.cont [10/16] %v999, 128
        %1022 = vxpose.xlu0.b32.cont [11/16] %v1000, 128
        %1023 = vxpose.xlu0.b32.cont [12/16] %v1001, 128
        %1024 = vxpose.xlu0.b32.cont [13/16] %v1002, 128
        %1025 = vxpose.xlu0.b32.cont [14/16] %v1003, 128
        %1026 = vxpose.xlu0.b32.cont [15/16] %v1004, 128
        %1027 = vxpose.xlu0.b32.end [16/16] %v1005, 128
        %v1028 = vpop.trf.xlu0
        %v1029 = vpop.trf.xlu0
        %v1030 = vpop.trf.xlu0
        %v1031 = vpop.trf.xlu0
        %v1032 = vpop.trf.xlu0
        %v1033 = vpop.trf.xlu0
        %v1034 = vpop.trf.xlu0
        %v1035 = vpop.trf.xlu0
        %v1036 = vpop.trf.xlu0
        %v1037 = vpop.trf.xlu0
        %v1038 = vpop.trf.xlu0
        %v1039 = vpop.trf.xlu0
        %v1040 = vpop.trf.xlu0
        %v1041 = vpop.trf.xlu0
        %v1042 = vpop.trf.xlu0
        %v1043 = vpop.trf.xlu0
        %1044 = vmatprep.subr.mxu0 0.0
        %1045 = vmatpush1.xpose.msra.mxu0 %v974
        %1046 = vmatprep.subr.mxu0 0.0
        %1047 = vmatpush1.xpose.msra.mxu0 %v975
        %1048 = vmatprep.subr.mxu0 0.0
        %1049 = vmatpush1.xpose.msra.mxu0 %v976
        %1050 = vmatprep.subr.mxu0 0.0
        %1051 = vmatpush1.xpose.msra.mxu0 %v977
        %1052 = vmatprep.subr.mxu0 0.0
        %1053 = vmatpush1.xpose.msra.mxu0 %v978
        %1054 = vmatprep.subr.mxu0 0.0
        %1055 = vmatpush1.xpose.msra.mxu0 %v979
        %1056 = vmatprep.subr.mxu0 0.0
        %1057 = vmatpush1.xpose.msra.mxu0 %v980
        %1058 = vmatprep.subr.mxu0 0.0
        %1059 = vmatpush1.xpose.msra.mxu0 %v981
        %1060 = vmatprep.subr.mxu0 0.0
        %1061 = vmatpush1.xpose.msra.mxu0 %v982
        %1062 = vmatprep.subr.mxu0 0.0
        %1063 = vmatpush1.xpose.msra.mxu0 %v983
        %1064 = vmatprep.subr.mxu0 0.0
        %1065 = vmatpush1.xpose.msra.mxu0 %v984
        %1066 = vmatprep.subr.mxu0 0.0
        %1067 = vmatpush1.xpose.msra.mxu0 %v985
        %1068 = vmatprep.subr.mxu0 0.0
        %1069 = vmatpush1.xpose.msra.mxu0 %v986
        %1070 = vmatprep.subr.mxu0 0.0
        %1071 = vmatpush1.xpose.msra.mxu0 %v987
        %1072 = vmatprep.subr.mxu0 0.0
        %1073 = vmatpush1.xpose.msra.mxu0 %v988
        %1074 = vmatprep.subr.mxu0 0.0
        %1075 = vmatpush1.xpose.msra.mxu0 %v989
        %1076 = vmatprep.subr.mxu0 0.0
        %1077 = vmatpush1.xpose.msra.mxu0 0.0
        %1078 = vmatprep.subr.mxu0 0.0
        %1079 = vmatpush1.xpose.msra.mxu0 0.0
        %1080 = vmatprep.subr.mxu0 0.0
        %1081 = vmatpush1.xpose.msra.mxu0 0.0
        %1082 = vmatprep.subr.mxu0 0.0
        %1083 = vmatpush1.xpose.msra.mxu0 0.0
        %1084 = vmatprep.subr.mxu0 0.0
        %1085 = vmatpush1.xpose.msra.mxu0 0.0
        %1086 = vmatprep.subr.mxu0 0.0
        %1087 = vmatpush1.xpose.msra.mxu0 0.0
        %1088 = vmatprep.subr.mxu0 0.0
        %1089 = vmatpush1.xpose.msra.mxu0 0.0
        %1090 = vmatprep.subr.mxu0 0.0
        %1091 = vmatpush1.xpose.msra.mxu0 0.0
        %1092 = vmatprep.subr.mxu0 0.0
        %1093 = vmatpush1.xpose.msra.mxu0 0.0
        %1094 = vmatprep.subr.mxu0 0.0
        %1095 = vmatpush1.xpose.msra.mxu0 0.0
        %1096 = vmatprep.subr.mxu0 0.0
        %1097 = vmatpush1.xpose.msra.mxu0 0.0
        %1098 = vmatprep.subr.mxu0 0.0
        %1099 = vmatpush1.xpose.msra.mxu0 0.0
        %1100 = vmatprep.subr.mxu0 0.0
        %1101 = vmatpush1.xpose.msra.mxu0 0.0
        %1102 = vmatprep.subr.mxu0 0.0
        %1103 = vmatpush1.xpose.msra.mxu0 0.0
        %1104 = vmatprep.subr.mxu0 0.0
        %1105 = vmatpush1.xpose.msra.mxu0 0.0
        %1106 = vmatprep.subr.mxu0 0.0
        %1107 = vmatpush1.xpose.msra.mxu0 0.0
        %1108 = vmatprep.mubr.f32.mxu0 0.0
        %1109 = vmatmul.mubr.f32.gmra.mrb[0].mxu0 %v1028
        %v1110 = vpop.f32.mrb[0].mxu0
        %v1111 = vadd.f32 %v1010, %v1110
        %v1112 = vpop.f32.mrb[0].mxu0
        %1113 = vdwg.mxu0
        %v1114 = vld [vmem:[%s471] sm:$0x7]
        %v1115 = vadd.f32 %v1111, %v1114
        %v1116 = vld [vmem:[#allocation2] sm:$0x7]
        %vm1117 = vcmask 1042432
        %v1118 = vsel %vm1117, %v1115, -inf
        %1119 = vmax.xlane.f32.xlu0 %v1118
        %v1120 = vpop.xlane.xlu0 %1119
        %v1121 = vmax.f32 %v1116, %v1120
        %v1122 = vsub.f32 %v1116, %v1121
        %v1123 = vmul.f32 %v1122, 1.442695
        %v1124 = vpow.pop %v1123
        %1126 = vset.pattern.permute.xlu0 0
        %1127 = vperm.xlu0 %1126, %v1121
        %v1128 = vpop.permute.xlu0 %1127
        %v1130 = vsub.f32 %v1115, %v1128
        %v1131 = vmul.f32 %v1130, 1.442695
        %v1132 = vpow.pop %v1131
        %v1133 = vld [vmem:[#allocation3] sm:$0x7]
        %v1134 = vmul.f32 %v1124, %v1133
        %v1135 = vsel %vm1117, %v1132, 0.0
        %1136 = vadd.xlane.f32.xlu0 %v1135
        %v1137 = vpop.xlane.xlu0 %1136
        %v1138 = vadd.f32 %v1134, %v1137
        %vm1139 = vcmask 2048
        %1140 = vst.msk [vmem:[#allocation3] sm:$0x7] %vm1139, %v1138
        %v1141 = vld [vmem:[#allocation4] sm:$0x7]
        %1143 = vset.pattern.permute.xlu0 0
        %1144 = vperm.xlu0 %1143, %v1124
        %v1145 = vpop.permute.xlu0 %1144
        %v1147 = vmul.f32 %v1145, %v1141
        %1148 = vmatprep.subr.mxu0 0.0
        %1149 = vmatpush1.msra.mxu0 %v673
        %1150 = vmatprep.subr.mxu0 0.0
        %1151 = vmatpush1.msra.mxu0 %v674
        %1152 = vmatprep.subr.mxu0 0.0
        %1153 = vmatpush1.msra.mxu0 %v675
        %1154 = vmatprep.subr.mxu0 0.0
        %1155 = vmatpush1.msra.mxu0 %v676
        %1156 = vmatprep.subr.mxu0 0.0
        %1157 = vmatpush1.msra.mxu0 %v677
        %1158 = vmatprep.subr.mxu0 0.0
        %1159 = vmatpush1.msra.mxu0 %v678
        %1160 = vmatprep.subr.mxu0 0.0
        %1161 = vmatpush1.msra.mxu0 %v679
        %1162 = vmatprep.subr.mxu0 0.0
        %1163 = vmatpush1.msra.mxu0 %v680
        %1164 = vmatprep.subr.mxu0 0.0
        %1165 = vmatpush1.msra.mxu0 %v681
        %1166 = vmatprep.subr.mxu0 0.0
        %1167 = vmatpush1.msra.mxu0 %v682
        %1168 = vmatprep.subr.mxu0 0.0
        %1169 = vmatpush1.msra.mxu0 %v683
        %1170 = vmatprep.subr.mxu0 0.0
        %1171 = vmatpush1.msra.mxu0 %v684
        %1172 = vmatprep.subr.mxu0 0.0
        %1173 = vmatpush1.msra.mxu0 %v685
        %1174 = vmatprep.subr.mxu0 0.0
        %1175 = vmatpush1.msra.mxu0 %v686
        %1176 = vmatprep.subr.mxu0 0.0
        %1177 = vmatpush1.msra.mxu0 %v687
        %1178 = vmatprep.subr.mxu0 0.0
        %1179 = vmatpush1.msra.mxu0 %v688
        %1180 = vmatprep.subr.mxu0 0.0
        %1181 = vmatpush1.msra.mxu0 0.0
        %1182 = vmatprep.subr.mxu0 0.0
        %1183 = vmatpush1.msra.mxu0 0.0
        %1184 = vmatprep.subr.mxu0 0.0
        %1185 = vmatpush1.msra.mxu0 0.0
        %1186 = vmatprep.subr.mxu0 0.0
        %1187 = vmatpush1.msra.mxu0 0.0
        %1188 = vmatprep.subr.mxu0 0.0
        %1189 = vmatpush1.msra.mxu0 0.0
        %1190 = vmatprep.subr.mxu0 0.0
        %1191 = vmatpush1.msra.mxu0 0.0
        %1192 = vmatprep.subr.mxu0 0.0
        %1193 = vmatpush1.msra.mxu0 0.0
        %1194 = vmatprep.subr.mxu0 0.0
        %1195 = vmatpush1.msra.mxu0 0.0
        %1196 = vmatprep.subr.mxu0 0.0
        %1197 = vmatpush1.msra.mxu0 0.0
        %1198 = vmatprep.subr.mxu0 0.0
        %1199 = vmatpush1.msra.mxu0 0.0
        %1200 = vmatprep.subr.mxu0 0.0
        %1201 = vmatpush1.msra.mxu0 0.0
        %1202 = vmatprep.subr.mxu0 0.0
        %1203 = vmatpush1.msra.mxu0 0.0
        %1204 = vmatprep.subr.mxu0 0.0
        %1205 = vmatpush1.msra.mxu0 0.0
        %1206 = vmatprep.subr.mxu0 0.0
        %1207 = vmatpush1.msra.mxu0 0.0
        %1208 = vmatprep.subr.mxu0 0.0
        %1209 = vmatpush1.msra.mxu0 0.0
        %1210 = vmatprep.subr.mxu0 0.0
        %1211 = vmatpush1.msra.mxu0 0.0
        %1212 = vmatprep.mubr.f32.mxu0 0.0
        %1213 = vmatmul.mubr.f32.gmra.mrb[0].mxu0 %v1132
        %v1214 = vpop.f32.mrb[0].mxu0
        %v1215 = vadd.f32 0.0, %v1214
        %v1216 = vpop.f32.mrb[0].mxu0
        %1217 = vdwg.mxu0
        %v1218 = vadd.f32 %v1147, %v1215
        %1219 = vst [vmem:[#allocation4] sm:$0x7] %v1218
        %1220 = vst.msk [vmem:[#allocation2] sm:$0x7] %vm1139, %v1121
        %s1221 = smul.u32 %s32, 4
        %s1222 = scalar_lea.vmem [#allocation5], %s1221
        %1223 = vst.msk [vmem:[%s1222] sm:$0x7] %vm1139, %v1121
        %s1224 = smul.u32 %s32, 128
        %s1225 = sshra.s32 %s1224, 7
        %s1226 = sand.u32 %s1224, 127
        %s1227 = smul.addr %s1225, 4
        %s1228 = scalar_lea.vmem %s480, %s1227
        %1229 = vst [vmem:[%s1228] sm:$0x7] %v1132
        %p1230 = scmp.eq.s32.totalorder %s32, 2
        // Predicated region
        $region73: #{tpu_custom_call.1} parent=59 // pred_check
          %p1231 = pneg %p1230
        $region74: #{tpu_custom_call.1} parent=59 // pred_check_branch
          %1233 = sbr.rel (%p1231) target = $region76
        $region75: #{tpu_custom_call.1} parent=59 // pred_region
          %v1234 = vld [vmem:[#allocation2] sm:$0x7]
          %v1235 = vld [vmem:[#allocation3] sm:$0x7]
          %v1236 = vrcp.pop %v1235
          %v1237 = vmul.f32 1.0, %v1236
          %v1238 = vld [vmem:[#allocation5] sm:$0x7]
          %v1239 = vsub.f32 %v1238, %v1234
          %v1240 = vmul.f32 %v1239, 1.442695
          %v1241 = vpow.pop %v1240
          %v1242 = vmul.f32 %v1241, %v1237
          %v1243 = vld [vmem:[%s480] sm:$0x7]
          %1245 = vset.pattern.permute.xlu0 0
          %1246 = vperm.xlu0 %1245, %v1242
          %v1247 = vpop.permute.xlu0 %1246
          %v1249 = vmul.f32 %v1243, %v1247
          %1250 = vst [vmem:[%s480] sm:$0x7] %v1249
          %s1251 = scalar_lea.vmem [#allocation5], 4
          %v1252 = vld [vmem:[%s1251] sm:$0x7]
          %v1253 = vsub.f32 %v1252, %v1234
          %v1254 = vmul.f32 %v1253, 1.442695
          %v1255 = vpow.pop %v1254
          %v1256 = vmul.f32 %v1255, %v1237
          %v1257 = vld [vmem:[%s480 + $0x4] sm:$0x7]
          %1259 = vset.pattern.permute.xlu0 0
          %1260 = vperm.xlu0 %1259, %v1256
          %v1261 = vpop.permute.xlu0 %1260
          %v1263 = vmul.f32 %v1257, %v1261
          %1264 = vst [vmem:[%s480 + $0x4] sm:$0x7] %v1263
          %s1265 = scalar_lea.vmem [#allocation5], 8
          %v1266 = vld [vmem:[%s1265] sm:$0x7]
          %v1267 = vsub.f32 %v1266, %v1234
          %v1268 = vmul.f32 %v1267, 1.442695
          %v1269 = vpow.pop %v1268
          %v1270 = vmul.f32 %v1269, %v1237
          %v1271 = vld [vmem:[%s480 + $0x8] sm:$0x7]
          %1273 = vset.pattern.permute.xlu0 0
          %1274 = vperm.xlu0 %1273, %v1270
          %v1275 = vpop.permute.xlu0 %1274
          %v1277 = vmul.f32 %v1271, %v1275
          %1278 = vst [vmem:[%s480 + $0x8] sm:$0x7] %v1277
          %v1279 = vld [vmem:[#allocation4] sm:$0x7]
          %1281 = vset.pattern.permute.xlu0 0
          %1282 = vperm.xlu0 %1281, %v1237
          %v1283 = vpop.permute.xlu0 %1282
          %v1285 = vmul.f32 %v1279, %v1283
          %v1286 = vld [vmem:[%s8] sm:$0xff]
          %v1287 = vld [vmem:[%s8 + $0x8] sm:$0xff]
          %v1288 = vld [vmem:[%s8 + $0x10] sm:$0xff]
          %v1289 = vld [vmem:[%s8 + $0x18] sm:$0xff]
          %v1290 = vld [vmem:[%s8 + $0x20] sm:$0xff]
          %v1291 = vld [vmem:[%s8 + $0x28] sm:$0xff]
          %v1292 = vld [vmem:[%s8 + $0x30] sm:$0xff]
          %v1293 = vld [vmem:[%s8 + $0x38] sm:$0xff]
          %v1294 = vld [vmem:[%s8 + $0x40] sm:$0xff]
          %v1295 = vld [vmem:[%s8 + $0x48] sm:$0xff]
          %v1296 = vld [vmem:[%s8 + $0x50] sm:$0xff]
          %v1297 = vld [vmem:[%s8 + $0x58] sm:$0xff]
          %v1298 = vld [vmem:[%s8 + $0x60] sm:$0xff]
          %v1299 = vld [vmem:[%s8 + $0x68] sm:$0xff]
          %v1300 = vld [vmem:[%s8 + $0x70] sm:$0xff]
          %v1301 = vld [vmem:[%s8 + $0x78] sm:$0xff]
          %v1302 = vld [vmem:[%s9] sm:$0x1]
          %v1304 = vlaneseq
          %v1305 = vshrl.u32 %v1304, 7
          %v1306 = vsub.s32 0, %v1305
          %v1307 = vrot.slane %v1302, %v1306
          %1309 = vmatprep.subr.mxu0 0.0
          %1310 = vmatpush1.msra.mxu0 %v1286
          %1311 = vmatprep.subr.mxu0 0.0
          %1312 = vmatpush1.msra.mxu0 %v1287
          %1313 = vmatprep.subr.mxu0 0.0
          %1314 = vmatpush1.msra.mxu0 %v1288
          %1315 = vmatprep.subr.mxu0 0.0
          %1316 = vmatpush1.msra.mxu0 %v1289
          %1317 = vmatprep.subr.mxu0 0.0
          %1318 = vmatpush1.msra.mxu0 %v1290
          %1319 = vmatprep.subr.mxu0 0.0
          %1320 = vmatpush1.msra.mxu0 %v1291
          %1321 = vmatprep.subr.mxu0 0.0
          %1322 = vmatpush1.msra.mxu0 %v1292
          %1323 = vmatprep.subr.mxu0 0.0
          %1324 = vmatpush1.msra.mxu0 %v1293
          %1325 = vmatprep.subr.mxu0 0.0
          %1326 = vmatpush1.msra.mxu0 %v1294
          %1327 = vmatprep.subr.mxu0 0.0
          %1328 = vmatpush1.msra.mxu0 %v1295
          %1329 = vmatprep.subr.mxu0 0.0
          %1330 = vmatpush1.msra.mxu0 %v1296
          %1331 = vmatprep.subr.mxu0 0.0
          %1332 = vmatpush1.msra.mxu0 %v1297
          %1333 = vmatprep.subr.mxu0 0.0
          %1334 = vmatpush1.msra.mxu0 %v1298
          %1335 = vmatprep.subr.mxu0 0.0
          %1336 = vmatpush1.msra.mxu0 %v1299
          %1337 = vmatprep.subr.mxu0 0.0
          %1338 = vmatpush1.msra.mxu0 %v1300
          %1339 = vmatprep.subr.mxu0 0.0
          %1340 = vmatpush1.msra.mxu0 %v1301
          %1341 = vmatprep.subr.mxu0 0.0
          %1342 = vmatpush1.msra.mxu0 0.0
          %1343 = vmatprep.subr.mxu0 0.0
          %1344 = vmatpush1.msra.mxu0 0.0
          %1345 = vmatprep.subr.mxu0 0.0
          %1346 = vmatpush1.msra.mxu0 0.0
          %1347 = vmatprep.subr.mxu0 0.0
          %1348 = vmatpush1.msra.mxu0 0.0
          %1349 = vmatprep.subr.mxu0 0.0
          %1350 = vmatpush1.msra.mxu0 0.0
          %1351 = vmatprep.subr.mxu0 0.0
          %1352 = vmatpush1.msra.mxu0 0.0
          %1353 = vmatprep.subr.mxu0 0.0
          %1354 = vmatpush1.msra.mxu0 0.0
          %1355 = vmatprep.subr.mxu0 0.0
          %1356 = vmatpush1.msra.mxu0 0.0
          %1357 = vmatprep.subr.mxu0 0.0
          %1358 = vmatpush1.msra.mxu0 0.0
          %1359 = vmatprep.subr.mxu0 0.0
          %1360 = vmatpush1.msra.mxu0 0.0
          %1361 = vmatprep.subr.mxu0 0.0
          %1362 = vmatpush1.msra.mxu0 0.0
          %1363 = vmatprep.subr.mxu0 0.0
          %1364 = vmatpush1.msra.mxu0 0.0
          %1365 = vmatprep.subr.mxu0 0.0
          %1366 = vmatpush1.msra.mxu0 0.0
          %1367 = vmatprep.subr.mxu0 0.0
          %1368 = vmatpush1.msra.mxu0 0.0
          %1369 = vmatprep.subr.mxu0 0.0
          %1370 = vmatpush1.msra.mxu0 0.0
          %1371 = vmatprep.subr.mxu0 0.0
          %1372 = vmatpush1.msra.mxu0 0.0
          %1373 = vmatprep.mubr.f32.mxu0 0.0
          %1374 = vmatmul.mubr.f32.gmra.mrb[0].mxu0 %v1285
          %v1375 = vpop.f32.mrb[0].mxu0
          %v1376 = vadd.f32 %v1307, %v1375
          %v1377 = vpop.f32.mrb[0].mxu0
          %1378 = vdwg.mxu0
          %vm1379 = vcmask 18432
          %1380 = vst.msk [vmem:[%s475] sm:$0x7] %vm1379, %v1376
        $region76: #{tpu_custom_call.1} parent=59 // pred_fallthru
          _
        %p1381 = scmp.lt.s32.totalorder %s31, 1
        %s1382 = scalar_select %p1381, %s31, 1
        %s1383 = smul.addr %s1382, 4
        %s1384 = scalar_lea.vmem %s10, %s1383
        %p1385 = scmp.lt.s32.totalorder %s31, 1
        %s1386 = scalar_select %p1385, %s31, 1
        %s1387 = smul.addr %s1386, 3
        %s1388 = smul.addr %s1387, 4
        %s1389 = scalar_lea.vmem %s11, %s1388
        // Predicated region
        $region77: #{tpu_custom_call.1} parent=59 // pred_check
          %p1390 = pneg %p281
        $region78: #{tpu_custom_call.1} parent=59 // pred_check_branch
          %1392 = sbr.rel (%p1390) target = $region80
        $region79: #{tpu_custom_call.1} parent=59 // pred_region
          _
        $region80: #{tpu_custom_call.1} parent=59 // pred_fallthru
          _
        // Predicated region
        $region81: #{tpu_custom_call.1} parent=59 // pred_check
          %p1393 = pneg %p307
        $region82: #{tpu_custom_call.1} parent=59 // pred_check_branch
          %1395 = sbr.rel (%p1393) target = $region84
        $region83: #{tpu_custom_call.1} parent=59 // pred_region
          _
        $region84: #{tpu_custom_call.1} parent=59 // pred_fallthru
          _
      $region60: #{tpu_custom_call.1} parent=5 // pred_fallthru
        _
      %p1396 = scmp.le.s32.totalorder 2, %s22
      // Predicated region
      $region85: #{tpu_custom_call.1} parent=5 // pred_check
        %p1397 = pneg %p1396
      $region86: #{tpu_custom_call.1} parent=5 // pred_check_branch
        %1399 = sbr.rel (%p1397) target = $region88
      $region87: #{tpu_custom_call.1} parent=5 // pred_region
        %s1400 = ssub.s32 %s22, 2
        // Predicated region
        $region89: #{tpu_custom_call.1} parent=87 // pred_check
          %p1401 = pneg %p287
        $region90: #{tpu_custom_call.1} parent=87 // pred_check_branch
          %1403 = sbr.rel (%p1401) target = $region92
        $region91: #{tpu_custom_call.1} parent=87 // pred_region
          %p1404 = scmp.lt.s32.totalorder %s33, 1
          %s1405 = scalar_select %p1404, %s33, 1
          %s1406 = smul.addr %s1405, 4
          %s1407 = scalar_lea.vmem %s10, %s1406
        $region92: #{tpu_custom_call.1} parent=87 // pred_fallthru
          _
        // Predicated region
        $region93: #{tpu_custom_call.1} parent=87 // pred_check
          %p1408 = pneg %p313
        $region94: #{tpu_custom_call.1} parent=87 // pred_check_branch
          %1410 = sbr.rel (%p1408) target = $region96
        $region95: #{tpu_custom_call.1} parent=87 // pred_region
          %p1411 = scmp.lt.s32.totalorder %s33, 1
          %s1412 = scalar_select %p1411, %s33, 1
          %s1413 = smul.addr %s1412, 3
          %s1414 = smul.addr %s1413, 4
          %s1415 = scalar_lea.vmem %s11, %s1414
        $region96: #{tpu_custom_call.1} parent=87 // pred_fallthru
          _
      $region88: #{tpu_custom_call.1} parent=5 // pred_fallthru
        _
    $region6: #{tpu_custom_call.1} parent=1 // loop_footer
      %s26 = sadd.s32 1, %s22
    $region7: #{tpu_custom_call.1} parent=1 // loop_footer_branch
      %21 = sbr.rel target = $region3
    $region8: #{tpu_custom_call.1} parent=1 // loop_exit
      _
    %1416 = vsyncpa [#allocation7], 1
    %s1417 = scalar_lea.sflag [#allocation7], 1
    %1418 = vsyncpa %s1417, 1
    %1419 = vsyncpa [#allocation9], 1

</llo_original>
